<compile_context>
chip_gen: v5e
topology: v5e:2x2
jax: 0.10.0
libtpu: 0.0.40
codegen_flags: <defaults>
</compile_context>

<pallas_src>
import jax
import jax.numpy as jnp
from jax.experimental import pallas as pl
from jax.experimental.pallas import tpu as pltpu

_EPS = 1e-8


def _round_up(x, m):
    return ((x + m - 1) // m) * m


# ----------------------------------------------------------------------------
# Channel-major math helpers (used inside the Pallas kernels).
#   scalars:  (C, te)           vectors: three (C, te) arrays (x, y, z)
#   weights are pre-transposed: whT (h, vi), wsT (so, si+h), wvT (vo, h), bT (so, 1)
# ----------------------------------------------------------------------------
def gvp_cm(s, v0, v1, v2, whT, wsT, wvT, bT, use_act):
    """One GVP layer (vector_gate=False), channel-major, fused matmuls."""
    te = s.shape[-1]
    # Fuse the 3 per-component matmuls into one MXU call each for Wh and Wv by
    # concatenating components along the lane axis (te is a multiple of 128, so
    # the concat / slices are whole-vreg moves).
    vcat = jnp.concatenate([v0, v1, v2], axis=-1)                     # (vi, 3*te)
    vh = jnp.dot(whT, vcat, preferred_element_type=jnp.float32)       # (h, 3*te)
    vh0, vh1, vh2 = vh[:, :te], vh[:, te:2 * te], vh[:, 2 * te:]
    vn = jnp.sqrt(jnp.maximum(vh0 * vh0 + vh1 * vh1 + vh2 * vh2, _EPS))  # (h, te)
    # Fused scalar path: single matmul on [s ; vn] (channel concat along sublanes).
    svcat = jnp.concatenate([s, vn], axis=0)                          # (si+h, te)
    sc = jnp.dot(wsT, svcat, preferred_element_type=jnp.float32) + bT  # (so, te)
    vofull = jnp.dot(wvT, vh, preferred_element_type=jnp.float32)     # (vo, 3*te)
    vo0, vo1, vo2 = vofull[:, :te], vofull[:, te:2 * te], vofull[:, 2 * te:]
    if use_act:
        vnorm = jnp.sqrt(jnp.maximum(vo0 * vo0 + vo1 * vo1 + vo2 * vo2, _EPS))
        gate = jax.nn.sigmoid(vnorm)
        vo0, vo1, vo2 = vo0 * gate, vo1 * gate, vo2 * gate
        sc = jnp.maximum(sc, 0.0)
    return sc, vo0, vo1, vo2


def scalar_layernorm_cm(s, gamma, beta, eps=1e-5):
    """LayerNorm over channels (axis 0).  gamma/beta: (so, 1)."""
    mu = jnp.mean(s, axis=0, keepdims=True)
    var = jnp.mean((s - mu) ** 2, axis=0, keepdims=True)
    return (s - mu) * jax.lax.rsqrt(var + eps) * gamma + beta


def vector_norm_cm(v0, v1, v2):
    """GVP LayerNorm vector branch: v / sqrt(mean_channels(||v||^2))."""
    n2 = jnp.maximum(v0 * v0 + v1 * v1 + v2 * v2, _EPS)               # (C, te)
    inv = jax.lax.rsqrt(jnp.mean(n2, axis=0, keepdims=True))          # (1, te)
    return v0 * inv, v1 * inv, v2 * inv


# ----------------------------------------------------------------------------
# Pallas kernels
# ----------------------------------------------------------------------------
def _message_kernel(s_ref, v_ref, *rest):
    """message_func = GVP(act) -> GVP(act) -> GVP(no act).  Channel-major blocks."""
    ws = rest[:-2]
    os_ref, ov_ref = rest[-2], rest[-1]
    n = len(ws) // 4

    s = s_ref[...]                       # (Cin_s, te)
    v0, v1, v2 = v_ref[0], v_ref[1], v_ref[2]
    for li in range(n):
        whT, wsT, wvT, bT = (r[...] for r in ws[4 * li:4 * li + 4])
        s, v0, v1, v2 = gvp_cm(s, v0, v1, v2, whT, wsT, wvT, bT,
                               use_act=(li < n - 1))
    os_ref[...] = s
    ov_ref[0] = v0
    ov_ref[1] = v1
    ov_ref[2] = v2


def _update_kernel(dhs_ref, revs_ref, mask_ref, dhv_ref, hes_ref, hev_ref, *rest):
    """merge_duplicate_edges + residual + norm0 + ff_func + residual + norm1."""
    os_ref, ov_ref = rest[-2], rest[-1]
    g0, b0 = rest[0], rest[1]
    g1, b1 = rest[-4], rest[-3]
    ffw = rest[2:-4]
    nff = len(ffw) // 4

    dhs = dhs_ref[...]                                  # (so, te)
    revs = revs_ref[...]                                # (so, te)
    mask = mask_ref[...]                                # (1, te)  1.0 iff reverse edge exists
    merged = jnp.where(mask > 0.5, (dhs + revs) * 0.5, dhs)

    # residual + norm[0]  (dropout == identity at inference)
    xs = hes_ref[...] + merged
    xv0 = hev_ref[0] + dhv_ref[0]
    xv1 = hev_ref[1] + dhv_ref[1]
    xv2 = hev_ref[2] + dhv_ref[2]
    xs = scalar_layernorm_cm(xs, g0[...], b0[...])
    xv0, xv1, xv2 = vector_norm_cm(xv0, xv1, xv2)

    # ff_func = GVP(act) -> GVP(no act)
    fs, fv0, fv1, fv2 = xs, xv0, xv1, xv2
    for li in range(nff):
        whT, wsT, wvT, bT = (r[...] for r in ffw[4 * li:4 * li + 4])
        fs, fv0, fv1, fv2 = gvp_cm(fs, fv0, fv1, fv2, whT, wsT, wvT, bT,
                                   use_act=(li < nff - 1))

    # residual + norm[1]
    xs = scalar_layernorm_cm(xs + fs, g1[...], b1[...])
    xv0, xv1, xv2 = vector_norm_cm(xv0 + fv0, xv1 + fv1, xv2 + fv2)

    os_ref[...] = xs
    ov_ref[0] = xv0
    ov_ref[1] = xv1
    ov_ref[2] = xv2


# ----------------------------------------------------------------------------
# pallas_call wrappers
# ----------------------------------------------------------------------------
def _weight_spec(shape):
    nd = len(shape)
    return pl.BlockSpec(shape, lambda e, _nd=nd: (0,) * _nd)


def run_message(s_in_cm, v_in_cm, msg_w, so, vo, te):
    E_pad = s_in_cm.shape[-1]
    weights = [w for layer in msg_w for w in layer]
    in_specs = ([pl.BlockSpec((s_in_cm.shape[0], te), lambda e: (0, e)),
                 pl.BlockSpec((3, v_in_cm.shape[1], te), lambda e: (0, 0, e))]
                + [_weight_spec(w.shape) for w in weights])
    out_shape = (jax.ShapeDtypeStruct((so, E_pad), jnp.float32),
                 jax.ShapeDtypeStruct((3, vo, E_pad), jnp.float32))
    out_specs = (pl.BlockSpec((so, te), lambda e: (0, e)),
                 pl.BlockSpec((3, vo, te), lambda e: (0, 0, e)))
    return pl.pallas_call(
        _message_kernel,
        grid=(E_pad // te,),
        in_specs=in_specs,
        out_specs=out_specs,
        out_shape=out_shape,
        compiler_params=pltpu.CompilerParams(dimension_semantics=("parallel",)),
    )(s_in_cm, v_in_cm, *weights)


def run_update(dh_s, rev_s, mask, dh_v, hE_s, hE_v, w_cm, te):
    so, E_pad = dh_s.shape
    vo = dh_v.shape[1]
    g0, b0 = w_cm['norm0']
    g1, b1 = w_cm['norm1']
    ff_weights = [w for layer in w_cm['ff'] for w in layer]
    args = [dh_s, rev_s, mask, dh_v, hE_s, hE_v, g0, b0] + ff_weights + [g1, b1]
    in_specs = ([pl.BlockSpec((so, te), lambda e: (0, e)),
                 pl.BlockSpec((so, te), lambda e: (0, e)),
                 pl.BlockSpec((1, te), lambda e: (0, e)),
                 pl.BlockSpec((3, vo, te), lambda e: (0, 0, e)),
                 pl.BlockSpec((so, te), lambda e: (0, e)),
                 pl.BlockSpec((3, hE_v.shape[1], te), lambda e: (0, 0, e)),
                 _weight_spec(g0.shape), _weight_spec(b0.shape)]
                + [_weight_spec(w.shape) for w in ff_weights]
                + [_weight_spec(g1.shape), _weight_spec(b1.shape)])
    out_shape = (jax.ShapeDtypeStruct((so, E_pad), jnp.float32),
                 jax.ShapeDtypeStruct((3, vo, E_pad), jnp.float32))
    out_specs = (pl.BlockSpec((so, te), lambda e: (0, e)),
                 pl.BlockSpec((3, vo, te), lambda e: (0, 0, e)))
    return pl.pallas_call(
        _update_kernel,
        grid=(E_pad // te,),
        in_specs=in_specs,
        out_specs=out_specs,
        out_shape=out_shape,
        compiler_params=pltpu.CompilerParams(dimension_semantics=("parallel",)),
    )(*args)


# ----------------------------------------------------------------------------
# Weight preprocessing: PyTorch-style (in, out) weights -> channel-major kernel
# operands (transposed; biases as (so, 1)).
# ----------------------------------------------------------------------------
def prep_weights_cm(params):
    def prep_gvp(wh, wsw, wsb, wv):
        return (wh.T, wsw.T, wv.T, wsb.T)

    return {
        'msg': [prep_gvp(*layer) for layer in params['msg']],
        'ff': [prep_gvp(*layer) for layer in params['ff']],
        'norm0': tuple(g.T for g in params['norm0']),
        'norm1': tuple(g.T for g in params['norm1']),
    }


# ----------------------------------------------------------------------------
# Reverse-edge permutation (replaces the O(N^2) dense scatter/gather).
# For each directed edge e=(u,v) find e' with (v,u); also return an exists mask.
# ----------------------------------------------------------------------------
def build_reverse_index(edge_index, num_nodes):
    src, dst = edge_index[0], edge_index[1]
    E = src.shape[0]
    key = src.astype(jnp.int32) * num_nodes + dst.astype(jnp.int32)
    rkey = dst.astype(jnp.int32) * num_nodes + src.astype(jnp.int32)
    order = jnp.argsort(key)
    sorted_key = key[order]
    pos = jnp.clip(jnp.searchsorted(sorted_key, rkey), 0, E - 1)
    cand = order[pos]
    exists = sorted_key[pos] == rkey
    rev_idx = jnp.where(exists, cand, jnp.arange(E, dtype=cand.dtype))
    return rev_idx.astype(jnp.int32), exists


# ----------------------------------------------------------------------------
# Full EdgeLayer forward (node_mask=None path)
# ----------------------------------------------------------------------------
def edge_layer_forward(params, h_V, edge_index, h_E, te=256):
    s_V, v_V = h_V            # (N, si), (N, vi, 3)
    s_E, v_E = h_E            # (E, se), (E, ve, 3)
    src, dst = edge_index[0], edge_index[1]
    N = s_V.shape[0]
    E = s_E.shape[0]

    so = params['norm0'][0].shape[-1]
    vo = params['ff'][-1][3].shape[-1]

    # tuple_cat(h_V_i, h_E, h_V_j) -- data-dependent gather stays in JAX glue
    s_in = jnp.concatenate([s_V[src], s_E, s_V[dst]], axis=-1)        # (E, 2si+se)
    v_in = jnp.concatenate([v_V[src], v_E, v_V[dst]], axis=-2)        # (E, 2vi+ve, 3)

    # Pad the edge axis to a multiple of te (te itself a multiple of 128) so the
    # grid never drops a tail; padded columns are finite garbage and sliced off.
    E_pad = _round_up(max(E, 128), 128)
    te = _round_up(max(128, min(te, E_pad)), 128)
    E_pad = _round_up(E_pad, te)
    # NOTE(v7x): for real graphs keep E_pad // te >= 2 so "parallel" can use both TCs.
    pad = E_pad - E

    # channel-major (edges on lanes) layout
    s_in_cm = jnp.pad(s_in, ((0, pad), (0, 0))).T                                  # (Cs, E_pad)
    v_in_cm = jnp.transpose(jnp.pad(v_in, ((0, pad), (0, 0), (0, 0))), (2, 1, 0))  # (3, Cv, E_pad)
    s_E_cm = jnp.pad(s_E, ((0, pad), (0, 0))).T                                    # (so, E_pad)
    v_E_cm = jnp.transpose(jnp.pad(v_E, ((0, pad), (0, 0), (0, 0))), (2, 1, 0))    # (3, ve, E_pad)

    w_cm = prep_weights_cm(params)

    dh_s_cm, dh_v_cm = run_message(s_in_cm, v_in_cm, w_cm['msg'], so, vo, te)

    # merge_duplicate_edges_geometric: reverse-edge gather via precomputed
    # permutation + exists mask (O(E), no N x N buffer, no value==0 test).
    rev_idx, rev_exists = build_reverse_index(edge_index, N)
    rev_idx_pad = jnp.pad(rev_idx, (0, pad))
    mask_pad = jnp.pad(rev_exists.astype(jnp.float32), (0, pad))[None, :]          # (1, E_pad)
    rev_s_cm = jnp.take(dh_s_cm, rev_idx_pad, axis=1)                              # (so, E_pad)

    out_s_cm, out_v_cm = run_update(dh_s_cm, rev_s_cm, mask_pad, dh_v_cm,
                                    s_E_cm, v_E_cm, w_cm, te)
    out_s = out_s_cm[:, :E].T                                                      # (E, so)
    out_v = jnp.transpose(out_v_cm[:, :, :E], (2, 1, 0))                           # (E, vo, 3)
    return out_s, out_v


# ----------------------------------------------------------------------------
# Pure-JAX reference (edge-major layout, dense-adjacency reverse gather;
# independent of the kernel path, used only for validation).
# ----------------------------------------------------------------------------
def gvp_ref(s, v0, v1, v2, wh, wsw, wsb, wv, use_act):
    si = s.shape[-1]
    vh0 = jnp.dot(v0, wh)
    vh1 = jnp.dot(v1, wh)
    vh2 = jnp.dot(v2, wh)
    vn = jnp.sqrt(jnp.maximum(vh0 * vh0 + vh1 * vh1 + vh2 * vh2, _EPS))
    sc = jnp.dot(s, wsw[:si]) + jnp.dot(vn, wsw[si:]) + wsb
    vo0, vo1, vo2 = jnp.dot(vh0, wv), jnp.dot(vh1, wv), jnp.dot(vh2, wv)
    if use_act:
        vnorm = jnp.sqrt(jnp.maximum(vo0 * vo0 + vo1 * vo1 + vo2 * vo2, _EPS))
        gate = jax.nn.sigmoid(vnorm)
        vo0, vo1, vo2 = vo0 * gate, vo1 * gate, vo2 * gate
        sc = jnp.maximum(sc, 0.0)
    return sc, vo0, vo1, vo2


def scalar_layernorm_ref(s, gamma, beta, eps=1e-5):
    mu = jnp.mean(s, axis=-1, keepdims=True)
    var = jnp.mean((s - mu) ** 2, axis=-1, keepdims=True)
    return (s - mu) / jnp.sqrt(var + eps) * gamma + beta


def vector_norm_ref(v0, v1, v2):
    n2 = jnp.maximum(v0 * v0 + v1 * v1 + v2 * v2, _EPS)
    inv = 1.0 / jnp.sqrt(jnp.mean(n2, axis=-1, keepdims=True))
    return v0 * inv, v1 * inv, v2 * inv


def edge_layer_reference(params, h_V, edge_index, h_E):
    s_V, v_V = h_V
    s_E, v_E = h_E
    src, dst = edge_index[0], edge_index[1]
    s = jnp.concatenate([s_V[src], s_E, s_V[dst]], -1)
    v = jnp.concatenate([v_V[src], v_E, v_V[dst]], -2)
    v0, v1, v2 = v[..., 0], v[..., 1], v[..., 2]
    nmsg = len(params['msg'])
    for li, (wh, wsw, wsb, wv) in enumerate(params['msg']):
        s, v0, v1, v2 = gvp_ref(s, v0, v1, v2, wh, wsw, wsb, wv, li < nmsg - 1)
    N, so = s_V.shape[0], s.shape[-1]
    coll = jnp.zeros((N, N, so), s.dtype).at[src, dst].set(s)
    adj = jnp.zeros((N, N), jnp.bool_).at[src, dst].set(True)
    rev = coll[dst, src]
    rev_exists = adj[dst, src]
    merged = jnp.where(rev_exists[:, None], (s + rev) * 0.5, s)
    xs = s_E + merged
    xv0, xv1, xv2 = v_E[..., 0] + v0, v_E[..., 1] + v1, v_E[..., 2] + v2
    g0, b0 = params['norm0']
    xs = scalar_layernorm_ref(xs, g0, b0)
    xv0, xv1, xv2 = vector_norm_ref(xv0, xv1, xv2)
    fs, fv0, fv1, fv2 = xs, xv0, xv1, xv2
    nff = len(params['ff'])
    for li, (wh, wsw, wsb, wv) in enumerate(params['ff']):
        fs, fv0, fv1, fv2 = gvp_ref(fs, fv0, fv1, fv2, wh, wsw, wsb, wv, li < nff - 1)
    g1, b1 = params['norm1']
    xs = scalar_layernorm_ref(xs + fs, g1, b1)
    xv0, xv1, xv2 = vector_norm_ref(xv0 + fv0, xv1 + fv1, xv2 + fv2)
    return xs, jnp.stack([xv0, xv1, xv2], axis=-1)


# ----------------------------------------------------------------------------
# Deterministic parameter init (synthetic weights, PyTorch Linear shapes
# transposed to (in, out); biases stored as (1, out)).
# ----------------------------------------------------------------------------
def init_params(key, node_dims, edge_dims):
    si, vi = node_dims
    se, ve = edge_dims
    so, vo = edge_dims
    keys = iter(jax.random.split(key, 64))

    def lin(shape):
        return jax.random.normal(next(keys), shape, jnp.float32) * 0.2

    def gvp_params(in_s, in_v, out_s, out_v):
        h = max(in_v, out_v)
        return (lin((in_v, h)),            # wh
                lin((in_s + h, out_s)),    # ws weight
                lin((1, out_s)),           # ws bias
                lin((h, out_v)))           # wv

    msg = [gvp_params(2 * si + se, 2 * vi + ve, so, vo),
           gvp_params(so, vo, so, vo),
           gvp_params(so, vo, so, vo)]
    ff = [gvp_params(so, vo, 4 * so, 2 * vo),
          gvp_params(4 * so, 2 * vo, so, vo)]
    norm0 = (jnp.ones((1, so), jnp.float32), jnp.zeros((1, so), jnp.float32))
    norm1 = (jnp.ones((1, so), jnp.float32), jnp.zeros((1, so), jnp.float32))
    return {'msg': msg, 'ff': ff, 'norm0': norm0, 'norm1': norm1}


# TODO(synk): training-mode GVP Dropout (drops whole vector channels) and the
# node_mask branch are not implemented; forward corresponds to eval/inference.

if __name__ == "__main__":
    key = jax.random.PRNGKey(0)
    k1, k2, k3, k4, kp = jax.random.split(key, 5)

    N, E = 16, 64
    node_dims = (16, 4)   # (si, vi)
    edge_dims = (16, 4)   # (se, ve) == (so, vo)
    si, vi = node_dims
    se, ve = edge_dims

    s_V = jax.random.normal(k1, (N, si), jnp.float32)
    v_V = jax.random.normal(k2, (N, vi, 3), jnp.float32)
    s_E = jax.random.normal(k3, (E, se), jnp.float32)
    v_E = jax.random.normal(k4, (E, ve, 3), jnp.float32)

    # kNN-style sparse graph: each node connects to offsets {1, 2, 3, N-1};
    # offsets 1 and N-1 form bidirectional pairs (exercises duplicate-edge merge).
    srcs = jnp.repeat(jnp.arange(N), 4)
    offsets = jnp.tile(jnp.array([1, 2, 3, N - 1]), N)
    dsts = (srcs + offsets) % N
    edge_index = jnp.stack([srcs, dsts], axis=0).astype(jnp.int32)   # (2, E)

    params = init_params(kp, node_dims, edge_dims)

    fwd = jax.jit(lambda sv, vv, ei, se_, ve_: edge_layer_forward(
        params, (sv, vv), ei, (se_, ve_), te=256))
    out_s, out_v = fwd(s_V, v_V, edge_index, s_E, v_E)
    jax.block_until_ready((out_s, out_v))

    ref_s, ref_v = edge_layer_reference(params, (s_V, v_V), edge_index, (s_E, v_E))
    assert out_s.shape == (E, se) and out_v.shape == (E, ve, 3)
    assert jnp.allclose(out_s, ref_s, atol=1e-3, rtol=1e-3), \
        float(jnp.max(jnp.abs(out_s - ref_s)))
    assert jnp.allclose(out_v, ref_v, atol=1e-3, rtol=1e-3), \
        float(jnp.max(jnp.abs(out_v - ref_v)))

    print("KERNEL_OK")
</pallas_src>

<mosaic_0001>
module attributes {stable_mosaic.version = 11 : i64} {
  func.func @_message_kernel(%arg0: i32, %arg1: memref<48x128xf32, #tpu.memory_space<vmem>>, %arg2: memref<3x12x128xf32, #tpu.memory_space<vmem>>, %arg3: memref<12x12xf32, #tpu.memory_space<vmem>>, %arg4: memref<16x60xf32, #tpu.memory_space<vmem>>, %arg5: memref<4x12xf32, #tpu.memory_space<vmem>>, %arg6: memref<16x1xf32, #tpu.memory_space<vmem>>, %arg7: memref<4x4xf32, #tpu.memory_space<vmem>>, %arg8: memref<16x20xf32, #tpu.memory_space<vmem>>, %arg9: memref<4x4xf32, #tpu.memory_space<vmem>>, %arg10: memref<16x1xf32, #tpu.memory_space<vmem>>, %arg11: memref<4x4xf32, #tpu.memory_space<vmem>>, %arg12: memref<16x20xf32, #tpu.memory_space<vmem>>, %arg13: memref<4x4xf32, #tpu.memory_space<vmem>>, %arg14: memref<16x1xf32, #tpu.memory_space<vmem>>, %arg15: memref<16x128xf32, #tpu.memory_space<vmem>>, %arg16: memref<3x4x128xf32, #tpu.memory_space<vmem>>) attributes {dimension_semantics = [#tpu.dimension_semantics<parallel>], iteration_bounds = array<i64: 1>, scalar_prefetch = 0 : i64, scratch_operands = 0 : i64, tpu.core_type = #tpu.core_type<tc>, window_params = [{transform_indices = @transform_0, window_bounds = array<i64: 48, 128>}, {transform_indices = @transform_1, window_bounds = array<i64: 3, 12, 128>}, {pipeline_mode = #tpu.pipeline_mode<synchronous>, transform_indices = @transform_2, window_bounds = array<i64: 12, 12>}, {pipeline_mode = #tpu.pipeline_mode<synchronous>, transform_indices = @transform_3, window_bounds = array<i64: 16, 60>}, {pipeline_mode = #tpu.pipeline_mode<synchronous>, transform_indices = @transform_4, window_bounds = array<i64: 4, 12>}, {pipeline_mode = #tpu.pipeline_mode<synchronous>, transform_indices = @transform_5, window_bounds = array<i64: 16, 1>}, {pipeline_mode = #tpu.pipeline_mode<synchronous>, transform_indices = @transform_6, window_bounds = array<i64: 4, 4>}, {pipeline_mode = #tpu.pipeline_mode<synchronous>, transform_indices = @transform_7, window_bounds = array<i64: 16, 20>}, {pipeline_mode = #tpu.pipeline_mode<synchronous>, transform_indices = @transform_8, window_bounds = array<i64: 4, 4>}, {pipeline_mode = #tpu.pipeline_mode<synchronous>, transform_indices = @transform_9, window_bounds = array<i64: 16, 1>}, {pipeline_mode = #tpu.pipeline_mode<synchronous>, transform_indices = @transform_10, window_bounds = array<i64: 4, 4>}, {pipeline_mode = #tpu.pipeline_mode<synchronous>, transform_indices = @transform_11, window_bounds = array<i64: 16, 20>}, {pipeline_mode = #tpu.pipeline_mode<synchronous>, transform_indices = @transform_12, window_bounds = array<i64: 4, 4>}, {pipeline_mode = #tpu.pipeline_mode<synchronous>, transform_indices = @transform_13, window_bounds = array<i64: 16, 1>}, {transform_indices = @transform_14, window_bounds = array<i64: 16, 128>}, {transform_indices = @transform_15, window_bounds = array<i64: 3, 4, 128>}]} {
    %c0 = arith.constant 0 : index
    %c0_0 = arith.constant 0 : index
    %0 = vector.load %arg1[%c0, %c0_0] : memref<48x128xf32, #tpu.memory_space<vmem>>, vector<48x128xf32>
    %c0_1 = arith.constant 0 : index
    %c0_2 = arith.constant 0 : index
    %c0_3 = arith.constant 0 : index
    %1 = vector.load %arg2[%c0_1, %c0_2, %c0_3] : memref<3x12x128xf32, #tpu.memory_space<vmem>>, vector<1x12x128xf32>
    %2 = vector.shape_cast %1 : vector<1x12x128xf32> to vector<12x128xf32>
    %c1 = arith.constant 1 : index
    %c0_4 = arith.constant 0 : index
    %c0_5 = arith.constant 0 : index
    %3 = vector.load %arg2[%c1, %c0_4, %c0_5] : memref<3x12x128xf32, #tpu.memory_space<vmem>>, vector<1x12x128xf32>
    %4 = vector.shape_cast %3 : vector<1x12x128xf32> to vector<12x128xf32>
    %c2 = arith.constant 2 : index
    %c0_6 = arith.constant 0 : index
    %c0_7 = arith.constant 0 : index
    %5 = vector.load %arg2[%c2, %c0_6, %c0_7] : memref<3x12x128xf32, #tpu.memory_space<vmem>>, vector<1x12x128xf32>
    %6 = vector.shape_cast %5 : vector<1x12x128xf32> to vector<12x128xf32>
    %c0_8 = arith.constant 0 : index
    %c0_9 = arith.constant 0 : index
    %7 = vector.load %arg3[%c0_8, %c0_9] : memref<12x12xf32, #tpu.memory_space<vmem>>, vector<12x12xf32>
    %c0_10 = arith.constant 0 : index
    %c0_11 = arith.constant 0 : index
    %8 = vector.load %arg4[%c0_10, %c0_11] : memref<16x60xf32, #tpu.memory_space<vmem>>, vector<16x60xf32>
    %c0_12 = arith.constant 0 : index
    %c0_13 = arith.constant 0 : index
    %9 = vector.load %arg5[%c0_12, %c0_13] : memref<4x12xf32, #tpu.memory_space<vmem>>, vector<4x12xf32>
    %c0_14 = arith.constant 0 : index
    %c0_15 = arith.constant 0 : index
    %10 = vector.load %arg6[%c0_14, %c0_15] : memref<16x1xf32, #tpu.memory_space<vmem>>, vector<16x1xf32>
    %11 = tpu.concatenate %2, %4, %6 in 1 : vector<12x128xf32>, vector<12x128xf32>, vector<12x128xf32> -> vector<12x384xf32>
    %cst = arith.constant dense<0.000000e+00> : vector<12x384xf32>
    %12 = tpu.matmul %7, %11, %cst {dimension_numbers = #tpu.dot_dimension_numbers<[1], [0], [0], [1], [0, 0, 1, 1], [], []>} : vector<12x12xf32>, vector<12x384xf32>, vector<12x384xf32> -> vector<12x384xf32>
    %13 = vector.extract_strided_slice %12 {offsets = [0, 0], sizes = [12, 128], strides = [1, 1]} : vector<12x384xf32> to vector<12x128xf32>
    %14 = vector.extract_strided_slice %12 {offsets = [0, 128], sizes = [12, 128], strides = [1, 1]} : vector<12x384xf32> to vector<12x128xf32>
    %15 = vector.extract_strided_slice %12 {offsets = [0, 256], sizes = [12, 128], strides = [1, 1]} : vector<12x384xf32> to vector<12x128xf32>
    %16 = arith.mulf %13, %13 : vector<12x128xf32>
    %17 = arith.mulf %14, %14 : vector<12x128xf32>
    %18 = arith.addf %16, %17 : vector<12x128xf32>
    %19 = arith.mulf %15, %15 : vector<12x128xf32>
    %20 = arith.addf %18, %19 : vector<12x128xf32>
    %cst_16 = arith.constant 9.99999993E-9 : f32
    %21 = vector.broadcast %cst_16 : f32 to vector<12x128xf32>
    %22 = arith.maximumf %20, %21 : vector<12x128xf32>
    %23 = math.sqrt %22 : vector<12x128xf32>
    %24 = tpu.concatenate %0, %23 in 0 : vector<48x128xf32>, vector<12x128xf32> -> vector<60x128xf32>
    %cst_17 = arith.constant dense<0.000000e+00> : vector<16x128xf32>
    %25 = tpu.matmul %8, %24, %cst_17 {dimension_numbers = #tpu.dot_dimension_numbers<[1], [0], [0], [1], [0, 0, 1, 1], [], []>} : vector<16x60xf32>, vector<60x128xf32>, vector<16x128xf32> -> vector<16x128xf32>
    %26 = vector.broadcast %10 : vector<16x1xf32> to vector<16x128xf32>
    %27 = arith.addf %25, %26 : vector<16x128xf32>
    %cst_18 = arith.constant dense<0.000000e+00> : vector<4x384xf32>
    %28 = tpu.matmul %9, %12, %cst_18 {dimension_numbers = #tpu.dot_dimension_numbers<[1], [0], [0], [1], [0, 0, 1, 1], [], []>} : vector<4x12xf32>, vector<12x384xf32>, vector<4x384xf32> -> vector<4x384xf32>
    %29 = vector.extract_strided_slice %28 {offsets = [0, 0], sizes = [4, 128], strides = [1, 1]} : vector<4x384xf32> to vector<4x128xf32>
    %30 = vector.extract_strided_slice %28 {offsets = [0, 128], sizes = [4, 128], strides = [1, 1]} : vector<4x384xf32> to vector<4x128xf32>
    %31 = vector.extract_strided_slice %28 {offsets = [0, 256], sizes = [4, 128], strides = [1, 1]} : vector<4x384xf32> to vector<4x128xf32>
    %32 = arith.mulf %29, %29 : vector<4x128xf32>
    %33 = arith.mulf %30, %30 : vector<4x128xf32>
    %34 = arith.addf %32, %33 : vector<4x128xf32>
    %35 = arith.mulf %31, %31 : vector<4x128xf32>
    %36 = arith.addf %34, %35 : vector<4x128xf32>
    %cst_19 = arith.constant 9.99999993E-9 : f32
    %37 = vector.broadcast %cst_19 : f32 to vector<4x128xf32>
    %38 = arith.maximumf %36, %37 : vector<4x128xf32>
    %39 = math.sqrt %38 : vector<4x128xf32>
    %40 = arith.negf %39 : vector<4x128xf32>
    %41 = math.exp %40 : vector<4x128xf32>
    %cst_20 = arith.constant 1.000000e+00 : f32
    %42 = vector.broadcast %cst_20 : f32 to vector<4x128xf32>
    %43 = arith.addf %42, %41 : vector<4x128xf32>
    %44 = arith.divf %42, %43 : vector<4x128xf32>
    %45 = arith.mulf %29, %44 : vector<4x128xf32>
    %46 = arith.mulf %30, %44 : vector<4x128xf32>
    %47 = arith.mulf %31, %44 : vector<4x128xf32>
    %cst_21 = arith.constant 0.000000e+00 : f32
    %48 = vector.broadcast %cst_21 : f32 to vector<16x128xf32>
    %49 = arith.maximumf %27, %48 : vector<16x128xf32>
    %c0_22 = arith.constant 0 : index
    %c0_23 = arith.constant 0 : index
    %50 = vector.load %arg7[%c0_22, %c0_23] : memref<4x4xf32, #tpu.memory_space<vmem>>, vector<4x4xf32>
    %c0_24 = arith.constant 0 : index
    %c0_25 = arith.constant 0 : index
    %51 = vector.load %arg8[%c0_24, %c0_25] : memref<16x20xf32, #tpu.memory_space<vmem>>, vector<16x20xf32>
    %c0_26 = arith.constant 0 : index
    %c0_27 = arith.constant 0 : index
    %52 = vector.load %arg9[%c0_26, %c0_27] : memref<4x4xf32, #tpu.memory_space<vmem>>, vector<4x4xf32>
    %c0_28 = arith.constant 0 : index
    %c0_29 = arith.constant 0 : index
    %53 = vector.load %arg10[%c0_28, %c0_29] : memref<16x1xf32, #tpu.memory_space<vmem>>, vector<16x1xf32>
    %54 = tpu.concatenate %45, %46, %47 in 1 : vector<4x128xf32>, vector<4x128xf32>, vector<4x128xf32> -> vector<4x384xf32>
    %cst_30 = arith.constant dense<0.000000e+00> : vector<4x384xf32>
    %55 = tpu.matmul %50, %54, %cst_30 {dimension_numbers = #tpu.dot_dimension_numbers<[1], [0], [0], [1], [0, 0, 1, 1], [], []>} : vector<4x4xf32>, vector<4x384xf32>, vector<4x384xf32> -> vector<4x384xf32>
    %56 = vector.extract_strided_slice %55 {offsets = [0, 0], sizes = [4, 128], strides = [1, 1]} : vector<4x384xf32> to vector<4x128xf32>
    %57 = vector.extract_strided_slice %55 {offsets = [0, 128], sizes = [4, 128], strides = [1, 1]} : vector<4x384xf32> to vector<4x128xf32>
    %58 = vector.extract_strided_slice %55 {offsets = [0, 256], sizes = [4, 128], strides = [1, 1]} : vector<4x384xf32> to vector<4x128xf32>
    %59 = arith.mulf %56, %56 : vector<4x128xf32>
    %60 = arith.mulf %57, %57 : vector<4x128xf32>
    %61 = arith.addf %59, %60 : vector<4x128xf32>
    %62 = arith.mulf %58, %58 : vector<4x128xf32>
    %63 = arith.addf %61, %62 : vector<4x128xf32>
    %cst_31 = arith.constant 9.99999993E-9 : f32
    %64 = vector.broadcast %cst_31 : f32 to vector<4x128xf32>
    %65 = arith.maximumf %63, %64 : vector<4x128xf32>
    %66 = math.sqrt %65 : vector<4x128xf32>
    %67 = tpu.concatenate %49, %66 in 0 : vector<16x128xf32>, vector<4x128xf32> -> vector<20x128xf32>
    %cst_32 = arith.constant dense<0.000000e+00> : vector<16x128xf32>
    %68 = tpu.matmul %51, %67, %cst_32 {dimension_numbers = #tpu.dot_dimension_numbers<[1], [0], [0], [1], [0, 0, 1, 1], [], []>} : vector<16x20xf32>, vector<20x128xf32>, vector<16x128xf32> -> vector<16x128xf32>
    %69 = vector.broadcast %53 : vector<16x1xf32> to vector<16x128xf32>
    %70 = arith.addf %68, %69 : vector<16x128xf32>
    %cst_33 = arith.constant dense<0.000000e+00> : vector<4x384xf32>
    %71 = tpu.matmul %52, %55, %cst_33 {dimension_numbers = #tpu.dot_dimension_numbers<[1], [0], [0], [1], [0, 0, 1, 1], [], []>} : vector<4x4xf32>, vector<4x384xf32>, vector<4x384xf32> -> vector<4x384xf32>
    %72 = vector.extract_strided_slice %71 {offsets = [0, 0], sizes = [4, 128], strides = [1, 1]} : vector<4x384xf32> to vector<4x128xf32>
    %73 = vector.extract_strided_slice %71 {offsets = [0, 128], sizes = [4, 128], strides = [1, 1]} : vector<4x384xf32> to vector<4x128xf32>
    %74 = vector.extract_strided_slice %71 {offsets = [0, 256], sizes = [4, 128], strides = [1, 1]} : vector<4x384xf32> to vector<4x128xf32>
    %75 = arith.mulf %72, %72 : vector<4x128xf32>
    %76 = arith.mulf %73, %73 : vector<4x128xf32>
    %77 = arith.addf %75, %76 : vector<4x128xf32>
    %78 = arith.mulf %74, %74 : vector<4x128xf32>
    %79 = arith.addf %77, %78 : vector<4x128xf32>
    %cst_34 = arith.constant 9.99999993E-9 : f32
    %80 = vector.broadcast %cst_34 : f32 to vector<4x128xf32>
    %81 = arith.maximumf %79, %80 : vector<4x128xf32>
    %82 = math.sqrt %81 : vector<4x128xf32>
    %83 = arith.negf %82 : vector<4x128xf32>
    %84 = math.exp %83 : vector<4x128xf32>
    %cst_35 = arith.constant 1.000000e+00 : f32
    %85 = vector.broadcast %cst_35 : f32 to vector<4x128xf32>
    %86 = arith.addf %85, %84 : vector<4x128xf32>
    %87 = arith.divf %85, %86 : vector<4x128xf32>
    %88 = arith.mulf %72, %87 : vector<4x128xf32>
    %89 = arith.mulf %73, %87 : vector<4x128xf32>
    %90 = arith.mulf %74, %87 : vector<4x128xf32>
    %cst_36 = arith.constant 0.000000e+00 : f32
    %91 = vector.broadcast %cst_36 : f32 to vector<16x128xf32>
    %92 = arith.maximumf %70, %91 : vector<16x128xf32>
    %c0_37 = arith.constant 0 : index
    %c0_38 = arith.constant 0 : index
    %93 = vector.load %arg11[%c0_37, %c0_38] : memref<4x4xf32, #tpu.memory_space<vmem>>, vector<4x4xf32>
    %c0_39 = arith.constant 0 : index
    %c0_40 = arith.constant 0 : index
    %94 = vector.load %arg12[%c0_39, %c0_40] : memref<16x20xf32, #tpu.memory_space<vmem>>, vector<16x20xf32>
    %c0_41 = arith.constant 0 : index
    %c0_42 = arith.constant 0 : index
    %95 = vector.load %arg13[%c0_41, %c0_42] : memref<4x4xf32, #tpu.memory_space<vmem>>, vector<4x4xf32>
    %c0_43 = arith.constant 0 : index
    %c0_44 = arith.constant 0 : index
    %96 = vector.load %arg14[%c0_43, %c0_44] : memref<16x1xf32, #tpu.memory_space<vmem>>, vector<16x1xf32>
    %97 = tpu.concatenate %88, %89, %90 in 1 : vector<4x128xf32>, vector<4x128xf32>, vector<4x128xf32> -> vector<4x384xf32>
    %cst_45 = arith.constant dense<0.000000e+00> : vector<4x384xf32>
    %98 = tpu.matmul %93, %97, %cst_45 {dimension_numbers = #tpu.dot_dimension_numbers<[1], [0], [0], [1], [0, 0, 1, 1], [], []>} : vector<4x4xf32>, vector<4x384xf32>, vector<4x384xf32> -> vector<4x384xf32>
    %99 = vector.extract_strided_slice %98 {offsets = [0, 0], sizes = [4, 128], strides = [1, 1]} : vector<4x384xf32> to vector<4x128xf32>
    %100 = vector.extract_strided_slice %98 {offsets = [0, 128], sizes = [4, 128], strides = [1, 1]} : vector<4x384xf32> to vector<4x128xf32>
    %101 = vector.extract_strided_slice %98 {offsets = [0, 256], sizes = [4, 128], strides = [1, 1]} : vector<4x384xf32> to vector<4x128xf32>
    %102 = arith.mulf %99, %99 : vector<4x128xf32>
    %103 = arith.mulf %100, %100 : vector<4x128xf32>
    %104 = arith.addf %102, %103 : vector<4x128xf32>
    %105 = arith.mulf %101, %101 : vector<4x128xf32>
    %106 = arith.addf %104, %105 : vector<4x128xf32>
    %cst_46 = arith.constant 9.99999993E-9 : f32
    %107 = vector.broadcast %cst_46 : f32 to vector<4x128xf32>
    %108 = arith.maximumf %106, %107 : vector<4x128xf32>
    %109 = math.sqrt %108 : vector<4x128xf32>
    %110 = tpu.concatenate %92, %109 in 0 : vector<16x128xf32>, vector<4x128xf32> -> vector<20x128xf32>
    %cst_47 = arith.constant dense<0.000000e+00> : vector<16x128xf32>
    %111 = tpu.matmul %94, %110, %cst_47 {dimension_numbers = #tpu.dot_dimension_numbers<[1], [0], [0], [1], [0, 0, 1, 1], [], []>} : vector<16x20xf32>, vector<20x128xf32>, vector<16x128xf32> -> vector<16x128xf32>
    %112 = vector.broadcast %96 : vector<16x1xf32> to vector<16x128xf32>
    %113 = arith.addf %111, %112 : vector<16x128xf32>
    %cst_48 = arith.constant dense<0.000000e+00> : vector<4x384xf32>
    %114 = tpu.matmul %95, %98, %cst_48 {dimension_numbers = #tpu.dot_dimension_numbers<[1], [0], [0], [1], [0, 0, 1, 1], [], []>} : vector<4x4xf32>, vector<4x384xf32>, vector<4x384xf32> -> vector<4x384xf32>
    %115 = vector.extract_strided_slice %114 {offsets = [0, 0], sizes = [4, 128], strides = [1, 1]} : vector<4x384xf32> to vector<4x128xf32>
    %116 = vector.extract_strided_slice %114 {offsets = [0, 128], sizes = [4, 128], strides = [1, 1]} : vector<4x384xf32> to vector<4x128xf32>
    %117 = vector.extract_strided_slice %114 {offsets = [0, 256], sizes = [4, 128], strides = [1, 1]} : vector<4x384xf32> to vector<4x128xf32>
    %c0_49 = arith.constant 0 : index
    %c0_50 = arith.constant 0 : index
    %118 = vector.load %arg15[%c0_49, %c0_50] : memref<16x128xf32, #tpu.memory_space<vmem>>, vector<16x128xf32>
    tpu.vector_store %arg15[%c0_49, %c0_50], %113 {strides = array<i32>} : memref<16x128xf32, #tpu.memory_space<vmem>>, vector<16x128xf32>,
    %c0_51 = arith.constant 0 : index
    %c0_52 = arith.constant 0 : index
    %c0_53 = arith.constant 0 : index
    %119 = vector.load %arg16[%c0_51, %c0_52, %c0_53] : memref<3x4x128xf32, #tpu.memory_space<vmem>>, vector<1x4x128xf32>
    %120 = vector.shape_cast %119 : vector<1x4x128xf32> to vector<4x128xf32>
    %121 = vector.shape_cast %115 : vector<4x128xf32> to vector<1x4x128xf32>
    tpu.vector_store %arg16[%c0_51, %c0_52, %c0_53], %121 {strides = array<i32>} : memref<3x4x128xf32, #tpu.memory_space<vmem>>, vector<1x4x128xf32>,
    %c1_54 = arith.constant 1 : index
    %c0_55 = arith.constant 0 : index
    %c0_56 = arith.constant 0 : index
    %122 = vector.load %arg16[%c1_54, %c0_55, %c0_56] : memref<3x4x128xf32, #tpu.memory_space<vmem>>, vector<1x4x128xf32>
    %123 = vector.shape_cast %122 : vector<1x4x128xf32> to vector<4x128xf32>
    %124 = vector.shape_cast %116 : vector<4x128xf32> to vector<1x4x128xf32>
    tpu.vector_store %arg16[%c1_54, %c0_55, %c0_56], %124 {strides = array<i32>} : memref<3x4x128xf32, #tpu.memory_space<vmem>>, vector<1x4x128xf32>,
    %c2_57 = arith.constant 2 : index
    %c0_58 = arith.constant 0 : index
    %c0_59 = arith.constant 0 : index
    %125 = vector.load %arg16[%c2_57, %c0_58, %c0_59] : memref<3x4x128xf32, #tpu.memory_space<vmem>>, vector<1x4x128xf32>
    %126 = vector.shape_cast %125 : vector<1x4x128xf32> to vector<4x128xf32>
    %127 = vector.shape_cast %117 : vector<4x128xf32> to vector<1x4x128xf32>
    tpu.vector_store %arg16[%c2_57, %c0_58, %c0_59], %127 {strides = array<i32>} : memref<3x4x128xf32, #tpu.memory_space<vmem>>, vector<1x4x128xf32>,
    return
  }
  func.func @transform_0(%arg0: i32) -> (i32, i32) {
    %c0_i32 = arith.constant 0 : i32
    %c0_i32_0 = arith.constant 0 : i32
    return %c0_i32, %arg0 : i32, i32
  }
  func.func @transform_1(%arg0: i32) -> (i32, i32, i32) {
    %c0_i32 = arith.constant 0 : i32
    %c0_i32_0 = arith.constant 0 : i32
    %c0_i32_1 = arith.constant 0 : i32
    return %c0_i32, %c0_i32_0, %arg0 : i32, i32, i32
  }
  func.func @transform_2(%arg0: i32) -> (i32, i32) {
    %c0_i32 = arith.constant 0 : i32
    %c0_i32_0 = arith.constant 0 : i32
    %c0_i32_1 = arith.constant 0 : i32
    return %c0_i32, %c0_i32_0 : i32, i32
  }
  func.func @transform_3(%arg0: i32) -> (i32, i32) {
    %c0_i32 = arith.constant 0 : i32
    %c0_i32_0 = arith.constant 0 : i32
    %c0_i32_1 = arith.constant 0 : i32
    return %c0_i32, %c0_i32_0 : i32, i32
  }
  func.func @transform_4(%arg0: i32) -> (i32, i32) {
    %c0_i32 = arith.constant 0 : i32
    %c0_i32_0 = arith.constant 0 : i32
    %c0_i32_1 = arith.constant 0 : i32
    return %c0_i32, %c0_i32_0 : i32, i32
  }
  func.func @transform_5(%arg0: i32) -> (i32, i32) {
    %c0_i32 = arith.constant 0 : i32
    %c0_i32_0 = arith.constant 0 : i32
    %c0_i32_1 = arith.constant 0 : i32
    return %c0_i32, %c0_i32_0 : i32, i32
  }
  func.func @transform_6(%arg0: i32) -> (i32, i32) {
    %c0_i32 = arith.constant 0 : i32
    %c0_i32_0 = arith.constant 0 : i32
    %c0_i32_1 = arith.constant 0 : i32
    return %c0_i32, %c0_i32_0 : i32, i32
  }
  func.func @transform_7(%arg0: i32) -> (i32, i32) {
    %c0_i32 = arith.constant 0 : i32
    %c0_i32_0 = arith.constant 0 : i32
    %c0_i32_1 = arith.constant 0 : i32
    return %c0_i32, %c0_i32_0 : i32, i32
  }
  func.func @transform_8(%arg0: i32) -> (i32, i32) {
    %c0_i32 = arith.constant 0 : i32
    %c0_i32_0 = arith.constant 0 : i32
    %c0_i32_1 = arith.constant 0 : i32
    return %c0_i32, %c0_i32_0 : i32, i32
  }
  func.func @transform_9(%arg0: i32) -> (i32, i32) {
    %c0_i32 = arith.constant 0 : i32
    %c0_i32_0 = arith.constant 0 : i32
    %c0_i32_1 = arith.constant 0 : i32
    return %c0_i32, %c0_i32_0 : i32, i32
  }
  func.func @transform_10(%arg0: i32) -> (i32, i32) {
    %c0_i32 = arith.constant 0 : i32
    %c0_i32_0 = arith.constant 0 : i32
    %c0_i32_1 = arith.constant 0 : i32
    return %c0_i32, %c0_i32_0 : i32, i32
  }
  func.func @transform_11(%arg0: i32) -> (i32, i32) {
    %c0_i32 = arith.constant 0 : i32
    %c0_i32_0 = arith.constant 0 : i32
    %c0_i32_1 = arith.constant 0 : i32
    return %c0_i32, %c0_i32_0 : i32, i32
  }
  func.func @transform_12(%arg0: i32) -> (i32, i32) {
    %c0_i32 = arith.constant 0 : i32
    %c0_i32_0 = arith.constant 0 : i32
    %c0_i32_1 = arith.constant 0 : i32
    return %c0_i32, %c0_i32_0 : i32, i32
  }
  func.func @transform_13(%arg0: i32) -> (i32, i32) {
    %c0_i32 = arith.constant 0 : i32
    %c0_i32_0 = arith.constant 0 : i32
    %c0_i32_1 = arith.constant 0 : i32
    return %c0_i32, %c0_i32_0 : i32, i32
  }
  func.func @transform_14(%arg0: i32) -> (i32, i32) {
    %c0_i32 = arith.constant 0 : i32
    %c0_i32_0 = arith.constant 0 : i32
    return %c0_i32, %arg0 : i32, i32
  }
  func.func @transform_15(%arg0: i32) -> (i32, i32, i32) {
    %c0_i32 = arith.constant 0 : i32
    %c0_i32_0 = arith.constant 0 : i32
    %c0_i32_1 = arith.constant 0 : i32
    return %c0_i32, %c0_i32_0, %arg0 : i32, i32, i32
  }
}

module attributes {stable_mosaic.version = 11 : i64} {
  func.func @_update_kernel(%arg0: i32, %arg1: memref<16x128xf32, #tpu.memory_space<vmem>>, %arg2: memref<16x128xf32, #tpu.memory_space<vmem>>, %arg3: memref<1x128xf32, #tpu.memory_space<vmem>>, %arg4: memref<3x4x128xf32, #tpu.memory_space<vmem>>, %arg5: memref<16x128xf32, #tpu.memory_space<vmem>>, %arg6: memref<3x4x128xf32, #tpu.memory_space<vmem>>, %arg7: memref<16x1xf32, #tpu.memory_space<vmem>>, %arg8: memref<16x1xf32, #tpu.memory_space<vmem>>, %arg9: memref<8x4xf32, #tpu.memory_space<vmem>>, %arg10: memref<64x24xf32, #tpu.memory_space<vmem>>, %arg11: memref<8x8xf32, #tpu.memory_space<vmem>>, %arg12: memref<64x1xf32, #tpu.memory_space<vmem>>, %arg13: memref<8x8xf32, #tpu.memory_space<vmem>>, %arg14: memref<16x72xf32, #tpu.memory_space<vmem>>, %arg15: memref<4x8xf32, #tpu.memory_space<vmem>>, %arg16: memref<16x1xf32, #tpu.memory_space<vmem>>, %arg17: memref<16x1xf32, #tpu.memory_space<vmem>>, %arg18: memref<16x1xf32, #tpu.memory_space<vmem>>, %arg19: memref<16x128xf32, #tpu.memory_space<vmem>>, %arg20: memref<3x4x128xf32, #tpu.memory_space<vmem>>) attributes {dimension_semantics = [#tpu.dimension_semantics<parallel>], iteration_bounds = array<i64: 1>, scalar_prefetch = 0 : i64, scratch_operands = 0 : i64, tpu.core_type = #tpu.core_type<tc>, window_params = [{transform_indices = @transform_0, window_bounds = array<i64: 16, 128>}, {transform_indices = @transform_1, window_bounds = array<i64: 16, 128>}, {transform_indices = @transform_2, window_bounds = array<i64: 1, 128>}, {transform_indices = @transform_3, window_bounds = array<i64: 3, 4, 128>}, {transform_indices = @transform_4, window_bounds = array<i64: 16, 128>}, {transform_indices = @transform_5, window_bounds = array<i64: 3, 4, 128>}, {pipeline_mode = #tpu.pipeline_mode<synchronous>, transform_indices = @transform_6, window_bounds = array<i64: 16, 1>}, {pipeline_mode = #tpu.pipeline_mode<synchronous>, transform_indices = @transform_7, window_bounds = array<i64: 16, 1>}, {pipeline_mode = #tpu.pipeline_mode<synchronous>, transform_indices = @transform_8, window_bounds = array<i64: 8, 4>}, {pipeline_mode = #tpu.pipeline_mode<synchronous>, transform_indices = @transform_9, window_bounds = array<i64: 64, 24>}, {pipeline_mode = #tpu.pipeline_mode<synchronous>, transform_indices = @transform_10, window_bounds = array<i64: 8, 8>}, {pipeline_mode = #tpu.pipeline_mode<synchronous>, transform_indices = @transform_11, window_bounds = array<i64: 64, 1>}, {pipeline_mode = #tpu.pipeline_mode<synchronous>, transform_indices = @transform_12, window_bounds = array<i64: 8, 8>}, {pipeline_mode = #tpu.pipeline_mode<synchronous>, transform_indices = @transform_13, window_bounds = array<i64: 16, 72>}, {pipeline_mode = #tpu.pipeline_mode<synchronous>, transform_indices = @transform_14, window_bounds = array<i64: 4, 8>}, {pipeline_mode = #tpu.pipeline_mode<synchronous>, transform_indices = @transform_15, window_bounds = array<i64: 16, 1>}, {pipeline_mode = #tpu.pipeline_mode<synchronous>, transform_indices = @transform_16, window_bounds = array<i64: 16, 1>}, {pipeline_mode = #tpu.pipeline_mode<synchronous>, transform_indices = @transform_17, window_bounds = array<i64: 16, 1>}, {transform_indices = @transform_18, window_bounds = array<i64: 16, 128>}, {transform_indices = @transform_19, window_bounds = array<i64: 3, 4, 128>}]} {
    %c0 = arith.constant 0 : index
    %c0_0 = arith.constant 0 : index
    %0 = vector.load %arg1[%c0, %c0_0] : memref<16x128xf32, #tpu.memory_space<vmem>>, vector<16x128xf32>
    %c0_1 = arith.constant 0 : index
    %c0_2 = arith.constant 0 : index
    %1 = vector.load %arg2[%c0_1, %c0_2] : memref<16x128xf32, #tpu.memory_space<vmem>>, vector<16x128xf32>
    %c0_3 = arith.constant 0 : index
    %c0_4 = arith.constant 0 : index
    %2 = vector.load %arg3[%c0_3, %c0_4] : memref<1x128xf32, #tpu.memory_space<vmem>>, vector<1x128xf32>
    %cst = arith.constant 5.000000e-01 : f32
    %3 = vector.broadcast %cst : f32 to vector<1x128xf32>
    %4 = arith.cmpf ogt, %2, %3 : vector<1x128xf32>
    %5 = arith.addf %0, %1 : vector<16x128xf32>
    %cst_5 = arith.constant 5.000000e-01 : f32
    %6 = vector.broadcast %cst_5 : f32 to vector<16x128xf32>
    %7 = arith.mulf %5, %6 : vector<16x128xf32>
    %8 = vector.shape_cast %4 : vector<1x128xi1> to vector<1x128xi1>
    %9 = vector.broadcast %8 : vector<1x128xi1> to vector<16x128xi1>
    %10 = arith.select %9, %7, %0 : vector<16x128xi1>, vector<16x128xf32>
    %c0_6 = arith.constant 0 : index
    %c0_7 = arith.constant 0 : index
    %11 = vector.load %arg5[%c0_6, %c0_7] : memref<16x128xf32, #tpu.memory_space<vmem>>, vector<16x128xf32>
    %12 = arith.addf %11, %10 : vector<16x128xf32>
    %c0_8 = arith.constant 0 : index
    %c0_9 = arith.constant 0 : index
    %c0_10 = arith.constant 0 : index
    %13 = vector.load %arg6[%c0_8, %c0_9, %c0_10] : memref<3x4x128xf32, #tpu.memory_space<vmem>>, vector<1x4x128xf32>
    %14 = vector.shape_cast %13 : vector<1x4x128xf32> to vector<4x128xf32>
    %c0_11 = arith.constant 0 : index
    %c0_12 = arith.constant 0 : index
    %c0_13 = arith.constant 0 : index
    %15 = vector.load %arg4[%c0_11, %c0_12, %c0_13] : memref<3x4x128xf32, #tpu.memory_space<vmem>>, vector<1x4x128xf32>
    %16 = vector.shape_cast %15 : vector<1x4x128xf32> to vector<4x128xf32>
    %17 = arith.addf %14, %16 : vector<4x128xf32>
    %c1 = arith.constant 1 : index
    %c0_14 = arith.constant 0 : index
    %c0_15 = arith.constant 0 : index
    %18 = vector.load %arg6[%c1, %c0_14, %c0_15] : memref<3x4x128xf32, #tpu.memory_space<vmem>>, vector<1x4x128xf32>
    %19 = vector.shape_cast %18 : vector<1x4x128xf32> to vector<4x128xf32>
    %c1_16 = arith.constant 1 : index
    %c0_17 = arith.constant 0 : index
    %c0_18 = arith.constant 0 : index
    %20 = vector.load %arg4[%c1_16, %c0_17, %c0_18] : memref<3x4x128xf32, #tpu.memory_space<vmem>>, vector<1x4x128xf32>
    %21 = vector.shape_cast %20 : vector<1x4x128xf32> to vector<4x128xf32>
    %22 = arith.addf %19, %21 : vector<4x128xf32>
    %c2 = arith.constant 2 : index
    %c0_19 = arith.constant 0 : index
    %c0_20 = arith.constant 0 : index
    %23 = vector.load %arg6[%c2, %c0_19, %c0_20] : memref<3x4x128xf32, #tpu.memory_space<vmem>>, vector<1x4x128xf32>
    %24 = vector.shape_cast %23 : vector<1x4x128xf32> to vector<4x128xf32>
    %c2_21 = arith.constant 2 : index
    %c0_22 = arith.constant 0 : index
    %c0_23 = arith.constant 0 : index
    %25 = vector.load %arg4[%c2_21, %c0_22, %c0_23] : memref<3x4x128xf32, #tpu.memory_space<vmem>>, vector<1x4x128xf32>
    %26 = vector.shape_cast %25 : vector<1x4x128xf32> to vector<4x128xf32>
    %27 = arith.addf %24, %26 : vector<4x128xf32>
    %c0_24 = arith.constant 0 : index
    %c0_25 = arith.constant 0 : index
    %28 = vector.load %arg7[%c0_24, %c0_25] : memref<16x1xf32, #tpu.memory_space<vmem>>, vector<16x1xf32>
    %c0_26 = arith.constant 0 : index
    %c0_27 = arith.constant 0 : index
    %29 = vector.load %arg8[%c0_26, %c0_27] : memref<16x1xf32, #tpu.memory_space<vmem>>, vector<16x1xf32>
    %cst_28 = arith.constant dense<0.000000e+00> : vector<128xf32>
    %30 = vector.multi_reduction <add>, %12, %cst_28 [0] : vector<16x128xf32> to vector<128xf32>
    %31 = vector.shape_cast %30 : vector<128xf32> to vector<1x128xf32>
    %cst_29 = arith.constant 1.600000e+01 : f32
    %32 = vector.broadcast %cst_29 : f32 to vector<1x128xf32>
    %33 = arith.divf %31, %32 : vector<1x128xf32>
    %34 = vector.broadcast %33 : vector<1x128xf32> to vector<16x128xf32>
    %35 = arith.subf %12, %34 : vector<16x128xf32>
    %36 = arith.mulf %35, %35 : vector<16x128xf32>
    %cst_30 = arith.constant dense<0.000000e+00> : vector<128xf32>
    %37 = vector.multi_reduction <add>, %36, %cst_30 [0] : vector<16x128xf32> to vector<128xf32>
    %38 = vector.shape_cast %37 : vector<128xf32> to vector<1x128xf32>
    %cst_31 = arith.constant 1.600000e+01 : f32
    %39 = vector.broadcast %cst_31 : f32 to vector<1x128xf32>
    %40 = arith.divf %38, %39 : vector<1x128xf32>
    %41 = vector.broadcast %33 : vector<1x128xf32> to vector<16x128xf32>
    %42 = arith.subf %12, %41 : vector<16x128xf32>
    %cst_32 = arith.constant 9.99999974E-6 : f32
    %43 = vector.broadcast %cst_32 : f32 to vector<1x128xf32>
    %44 = arith.addf %40, %43 : vector<1x128xf32>
    %45 = math.rsqrt %44 : vector<1x128xf32>
    %46 = vector.broadcast %45 : vector<1x128xf32> to vector<16x128xf32>
    %47 = arith.mulf %42, %46 : vector<16x128xf32>
    %48 = vector.broadcast %28 : vector<16x1xf32> to vector<16x128xf32>
    %49 = arith.mulf %47, %48 : vector<16x128xf32>
    %50 = vector.broadcast %29 : vector<16x1xf32> to vector<16x128xf32>
    %51 = arith.addf %49, %50 : vector<16x128xf32>
    %52 = arith.mulf %17, %17 : vector<4x128xf32>
    %53 = arith.mulf %22, %22 : vector<4x128xf32>
    %54 = arith.addf %52, %53 : vector<4x128xf32>
    %55 = arith.mulf %27, %27 : vector<4x128xf32>
    %56 = arith.addf %54, %55 : vector<4x128xf32>
    %cst_33 = arith.constant 9.99999993E-9 : f32
    %57 = vector.broadcast %cst_33 : f32 to vector<4x128xf32>
    %58 = arith.maximumf %56, %57 : vector<4x128xf32>
    %cst_34 = arith.constant dense<0.000000e+00> : vector<128xf32>
    %59 = vector.multi_reduction <add>, %58, %cst_34 [0] : vector<4x128xf32> to vector<128xf32>
    %60 = vector.shape_cast %59 : vector<128xf32> to vector<1x128xf32>
    %cst_35 = arith.constant 4.000000e+00 : f32
    %61 = vector.broadcast %cst_35 : f32 to vector<1x128xf32>
    %62 = arith.divf %60, %61 : vector<1x128xf32>
    %63 = math.rsqrt %62 : vector<1x128xf32>
    %64 = vector.broadcast %63 : vector<1x128xf32> to vector<4x128xf32>
    %65 = arith.mulf %17, %64 : vector<4x128xf32>
    %66 = vector.broadcast %63 : vector<1x128xf32> to vector<4x128xf32>
    %67 = arith.mulf %22, %66 : vector<4x128xf32>
    %68 = vector.broadcast %63 : vector<1x128xf32> to vector<4x128xf32>
    %69 = arith.mulf %27, %68 : vector<4x128xf32>
    %c0_36 = arith.constant 0 : index
    %c0_37 = arith.constant 0 : index
    %70 = vector.load %arg9[%c0_36, %c0_37] : memref<8x4xf32, #tpu.memory_space<vmem>>, vector<8x4xf32>
    %c0_38 = arith.constant 0 : index
    %c0_39 = arith.constant 0 : index
    %71 = vector.load %arg10[%c0_38, %c0_39] : memref<64x24xf32, #tpu.memory_space<vmem>>, vector<64x24xf32>
    %c0_40 = arith.constant 0 : index
    %c0_41 = arith.constant 0 : index
    %72 = vector.load %arg11[%c0_40, %c0_41] : memref<8x8xf32, #tpu.memory_space<vmem>>, vector<8x8xf32>
    %c0_42 = arith.constant 0 : index
    %c0_43 = arith.constant 0 : index
    %73 = vector.load %arg12[%c0_42, %c0_43] : memref<64x1xf32, #tpu.memory_space<vmem>>, vector<64x1xf32>
    %74 = tpu.concatenate %65, %67, %69 in 1 : vector<4x128xf32>, vector<4x128xf32>, vector<4x128xf32> -> vector<4x384xf32>
    %cst_44 = arith.constant dense<0.000000e+00> : vector<8x384xf32>
    %75 = tpu.matmul %70, %74, %cst_44 {dimension_numbers = #tpu.dot_dimension_numbers<[1], [0], [0], [1], [0, 0, 1, 1], [], []>} : vector<8x4xf32>, vector<4x384xf32>, vector<8x384xf32> -> vector<8x384xf32>
    %76 = vector.extract_strided_slice %75 {offsets = [0, 0], sizes = [8, 128], strides = [1, 1]} : vector<8x384xf32> to vector<8x128xf32>
    %77 = vector.extract_strided_slice %75 {offsets = [0, 128], sizes = [8, 128], strides = [1, 1]} : vector<8x384xf32> to vector<8x128xf32>
    %78 = vector.extract_strided_slice %75 {offsets = [0, 256], sizes = [8, 128], strides = [1, 1]} : vector<8x384xf32> to vector<8x128xf32>
    %79 = arith.mulf %76, %76 : vector<8x128xf32>
    %80 = arith.mulf %77, %77 : vector<8x128xf32>
    %81 = arith.addf %79, %80 : vector<8x128xf32>
    %82 = arith.mulf %78, %78 : vector<8x128xf32>
    %83 = arith.addf %81, %82 : vector<8x128xf32>
    %cst_45 = arith.constant 9.99999993E-9 : f32
    %84 = vector.broadcast %cst_45 : f32 to vector<8x128xf32>
    %85 = arith.maximumf %83, %84 : vector<8x128xf32>
    %86 = math.sqrt %85 : vector<8x128xf32>
    %87 = tpu.concatenate %51, %86 in 0 : vector<16x128xf32>, vector<8x128xf32> -> vector<24x128xf32>
    %cst_46 = arith.constant dense<0.000000e+00> : vector<64x128xf32>
    %88 = tpu.matmul %71, %87, %cst_46 {dimension_numbers = #tpu.dot_dimension_numbers<[1], [0], [0], [1], [0, 0, 1, 1], [], []>} : vector<64x24xf32>, vector<24x128xf32>, vector<64x128xf32> -> vector<64x128xf32>
    %89 = vector.broadcast %73 : vector<64x1xf32> to vector<64x128xf32>
    %90 = arith.addf %88, %89 : vector<64x128xf32>
    %cst_47 = arith.constant dense<0.000000e+00> : vector<8x384xf32>
    %91 = tpu.matmul %72, %75, %cst_47 {dimension_numbers = #tpu.dot_dimension_numbers<[1], [0], [0], [1], [0, 0, 1, 1], [], []>} : vector<8x8xf32>, vector<8x384xf32>, vector<8x384xf32> -> vector<8x384xf32>
    %92 = vector.extract_strided_slice %91 {offsets = [0, 0], sizes = [8, 128], strides = [1, 1]} : vector<8x384xf32> to vector<8x128xf32>
    %93 = vector.extract_strided_slice %91 {offsets = [0, 128], sizes = [8, 128], strides = [1, 1]} : vector<8x384xf32> to vector<8x128xf32>
    %94 = vector.extract_strided_slice %91 {offsets = [0, 256], sizes = [8, 128], strides = [1, 1]} : vector<8x384xf32> to vector<8x128xf32>
    %95 = arith.mulf %92, %92 : vector<8x128xf32>
    %96 = arith.mulf %93, %93 : vector<8x128xf32>
    %97 = arith.addf %95, %96 : vector<8x128xf32>
    %98 = arith.mulf %94, %94 : vector<8x128xf32>
    %99 = arith.addf %97, %98 : vector<8x128xf32>
    %cst_48 = arith.constant 9.99999993E-9 : f32
    %100 = vector.broadcast %cst_48 : f32 to vector<8x128xf32>
    %101 = arith.maximumf %99, %100 : vector<8x128xf32>
    %102 = math.sqrt %101 : vector<8x128xf32>
    %103 = arith.negf %102 : vector<8x128xf32>
    %104 = math.exp %103 : vector<8x128xf32>
    %cst_49 = arith.constant 1.000000e+00 : f32
    %105 = vector.broadcast %cst_49 : f32 to vector<8x128xf32>
    %106 = arith.addf %105, %104 : vector<8x128xf32>
    %107 = arith.divf %105, %106 : vector<8x128xf32>
    %108 = arith.mulf %92, %107 : vector<8x128xf32>
    %109 = arith.mulf %93, %107 : vector<8x128xf32>
    %110 = arith.mulf %94, %107 : vector<8x128xf32>
    %cst_50 = arith.constant 0.000000e+00 : f32
    %111 = vector.broadcast %cst_50 : f32 to vector<64x128xf32>
    %112 = arith.maximumf %90, %111 : vector<64x128xf32>
    %c0_51 = arith.constant 0 : index
    %c0_52 = arith.constant 0 : index
    %113 = vector.load %arg13[%c0_51, %c0_52] : memref<8x8xf32, #tpu.memory_space<vmem>>, vector<8x8xf32>
    %c0_53 = arith.constant 0 : index
    %c0_54 = arith.constant 0 : index
    %114 = vector.load %arg14[%c0_53, %c0_54] : memref<16x72xf32, #tpu.memory_space<vmem>>, vector<16x72xf32>
    %c0_55 = arith.constant 0 : index
    %c0_56 = arith.constant 0 : index
    %115 = vector.load %arg15[%c0_55, %c0_56] : memref<4x8xf32, #tpu.memory_space<vmem>>, vector<4x8xf32>
    %c0_57 = arith.constant 0 : index
    %c0_58 = arith.constant 0 : index
    %116 = vector.load %arg16[%c0_57, %c0_58] : memref<16x1xf32, #tpu.memory_space<vmem>>, vector<16x1xf32>
    %117 = tpu.concatenate %108, %109, %110 in 1 : vector<8x128xf32>, vector<8x128xf32>, vector<8x128xf32> -> vector<8x384xf32>
    %cst_59 = arith.constant dense<0.000000e+00> : vector<8x384xf32>
    %118 = tpu.matmul %113, %117, %cst_59 {dimension_numbers = #tpu.dot_dimension_numbers<[1], [0], [0], [1], [0, 0, 1, 1], [], []>} : vector<8x8xf32>, vector<8x384xf32>, vector<8x384xf32> -> vector<8x384xf32>
    %119 = vector.extract_strided_slice %118 {offsets = [0, 0], sizes = [8, 128], strides = [1, 1]} : vector<8x384xf32> to vector<8x128xf32>
    %120 = vector.extract_strided_slice %118 {offsets = [0, 128], sizes = [8, 128], strides = [1, 1]} : vector<8x384xf32> to vector<8x128xf32>
    %121 = vector.extract_strided_slice %118 {offsets = [0, 256], sizes = [8, 128], strides = [1, 1]} : vector<8x384xf32> to vector<8x128xf32>
    %122 = arith.mulf %119, %119 : vector<8x128xf32>
    %123 = arith.mulf %120, %120 : vector<8x128xf32>
    %124 = arith.addf %122, %123 : vector<8x128xf32>
    %125 = arith.mulf %121, %121 : vector<8x128xf32>
    %126 = arith.addf %124, %125 : vector<8x128xf32>
    %cst_60 = arith.constant 9.99999993E-9 : f32
    %127 = vector.broadcast %cst_60 : f32 to vector<8x128xf32>
    %128 = arith.maximumf %126, %127 : vector<8x128xf32>
    %129 = math.sqrt %128 : vector<8x128xf32>
    %130 = tpu.concatenate %112, %129 in 0 : vector<64x128xf32>, vector<8x128xf32> -> vector<72x128xf32>
    %cst_61 = arith.constant dense<0.000000e+00> : vector<16x128xf32>
    %131 = tpu.matmul %114, %130, %cst_61 {dimension_numbers = #tpu.dot_dimension_numbers<[1], [0], [0], [1], [0, 0, 1, 1], [], []>} : vector<16x72xf32>, vector<72x128xf32>, vector<16x128xf32> -> vector<16x128xf32>
    %132 = vector.broadcast %116 : vector<16x1xf32> to vector<16x128xf32>
    %133 = arith.addf %131, %132 : vector<16x128xf32>
    %cst_62 = arith.constant dense<0.000000e+00> : vector<4x384xf32>
    %134 = tpu.matmul %115, %118, %cst_62 {dimension_numbers = #tpu.dot_dimension_numbers<[1], [0], [0], [1], [0, 0, 1, 1], [], []>} : vector<4x8xf32>, vector<8x384xf32>, vector<4x384xf32> -> vector<4x384xf32>
    %135 = vector.extract_strided_slice %134 {offsets = [0, 0], sizes = [4, 128], strides = [1, 1]} : vector<4x384xf32> to vector<4x128xf32>
    %136 = vector.extract_strided_slice %134 {offsets = [0, 128], sizes = [4, 128], strides = [1, 1]} : vector<4x384xf32> to vector<4x128xf32>
    %137 = vector.extract_strided_slice %134 {offsets = [0, 256], sizes = [4, 128], strides = [1, 1]} : vector<4x384xf32> to vector<4x128xf32>
    %138 = arith.addf %51, %133 : vector<16x128xf32>
    %c0_63 = arith.constant 0 : index
    %c0_64 = arith.constant 0 : index
    %139 = vector.load %arg17[%c0_63, %c0_64] : memref<16x1xf32, #tpu.memory_space<vmem>>, vector<16x1xf32>
    %c0_65 = arith.constant 0 : index
    %c0_66 = arith.constant 0 : index
    %140 = vector.load %arg18[%c0_65, %c0_66] : memref<16x1xf32, #tpu.memory_space<vmem>>, vector<16x1xf32>
    %cst_67 = arith.constant dense<0.000000e+00> : vector<128xf32>
    %141 = vector.multi_reduction <add>, %138, %cst_67 [0] : vector<16x128xf32> to vector<128xf32>
    %142 = vector.shape_cast %141 : vector<128xf32> to vector<1x128xf32>
    %cst_68 = arith.constant 1.600000e+01 : f32
    %143 = vector.broadcast %cst_68 : f32 to vector<1x128xf32>
    %144 = arith.divf %142, %143 : vector<1x128xf32>
    %145 = vector.broadcast %144 : vector<1x128xf32> to vector<16x128xf32>
    %146 = arith.subf %138, %145 : vector<16x128xf32>
    %147 = arith.mulf %146, %146 : vector<16x128xf32>
    %cst_69 = arith.constant dense<0.000000e+00> : vector<128xf32>
    %148 = vector.multi_reduction <add>, %147, %cst_69 [0] : vector<16x128xf32> to vector<128xf32>
    %149 = vector.shape_cast %148 : vector<128xf32> to vector<1x128xf32>
    %cst_70 = arith.constant 1.600000e+01 : f32
    %150 = vector.broadcast %cst_70 : f32 to vector<1x128xf32>
    %151 = arith.divf %149, %150 : vector<1x128xf32>
    %152 = vector.broadcast %144 : vector<1x128xf32> to vector<16x128xf32>
    %153 = arith.subf %138, %152 : vector<16x128xf32>
    %cst_71 = arith.constant 9.99999974E-6 : f32
    %154 = vector.broadcast %cst_71 : f32 to vector<1x128xf32>
    %155 = arith.addf %151, %154 : vector<1x128xf32>
    %156 = math.rsqrt %155 : vector<1x128xf32>
    %157 = vector.broadcast %156 : vector<1x128xf32> to vector<16x128xf32>
    %158 = arith.mulf %153, %157 : vector<16x128xf32>
    %159 = vector.broadcast %139 : vector<16x1xf32> to vector<16x128xf32>
    %160 = arith.mulf %158, %159 : vector<16x128xf32>
    %161 = vector.broadcast %140 : vector<16x1xf32> to vector<16x128xf32>
    %162 = arith.addf %160, %161 : vector<16x128xf32>
    %163 = arith.addf %65, %135 : vector<4x128xf32>
    %164 = arith.addf %67, %136 : vector<4x128xf32>
    %165 = arith.addf %69, %137 : vector<4x128xf32>
    %166 = arith.mulf %163, %163 : vector<4x128xf32>
    %167 = arith.mulf %164, %164 : vector<4x128xf32>
    %168 = arith.addf %166, %167 : vector<4x128xf32>
    %169 = arith.mulf %165, %165 : vector<4x128xf32>
    %170 = arith.addf %168, %169 : vector<4x128xf32>
    %cst_72 = arith.constant 9.99999993E-9 : f32
    %171 = vector.broadcast %cst_72 : f32 to vector<4x128xf32>
    %172 = arith.maximumf %170, %171 : vector<4x128xf32>
    %cst_73 = arith.constant dense<0.000000e+00> : vector<128xf32>
    %173 = vector.multi_reduction <add>, %172, %cst_73 [0] : vector<4x128xf32> to vector<128xf32>
    %174 = vector.shape_cast %173 : vector<128xf32> to vector<1x128xf32>
    %cst_74 = arith.constant 4.000000e+00 : f32
    %175 = vector.broadcast %cst_74 : f32 to vector<1x128xf32>
    %176 = arith.divf %174, %175 : vector<1x128xf32>
    %177 = math.rsqrt %176 : vector<1x128xf32>
    %178 = vector.broadcast %177 : vector<1x128xf32> to vector<4x128xf32>
    %179 = arith.mulf %163, %178 : vector<4x128xf32>
    %180 = vector.broadcast %177 : vector<1x128xf32> to vector<4x128xf32>
    %181 = arith.mulf %164, %180 : vector<4x128xf32>
    %182 = vector.broadcast %177 : vector<1x128xf32> to vector<4x128xf32>
    %183 = arith.mulf %165, %182 : vector<4x128xf32>
    %c0_75 = arith.constant 0 : index
    %c0_76 = arith.constant 0 : index
    %184 = vector.load %arg19[%c0_75, %c0_76] : memref<16x128xf32, #tpu.memory_space<vmem>>, vector<16x128xf32>
    tpu.vector_store %arg19[%c0_75, %c0_76], %162 {strides = array<i32>} : memref<16x128xf32, #tpu.memory_space<vmem>>, vector<16x128xf32>,
    %c0_77 = arith.constant 0 : index
    %c0_78 = arith.constant 0 : index
    %c0_79 = arith.constant 0 : index
    %185 = vector.load %arg20[%c0_77, %c0_78, %c0_79] : memref<3x4x128xf32, #tpu.memory_space<vmem>>, vector<1x4x128xf32>
    %186 = vector.shape_cast %185 : vector<1x4x128xf32> to vector<4x128xf32>
    %187 = vector.shape_cast %179 : vector<4x128xf32> to vector<1x4x128xf32>
    tpu.vector_store %arg20[%c0_77, %c0_78, %c0_79], %187 {strides = array<i32>} : memref<3x4x128xf32, #tpu.memory_space<vmem>>, vector<1x4x128xf32>,
    %c1_80 = arith.constant 1 : index
    %c0_81 = arith.constant 0 : index
    %c0_82 = arith.constant 0 : index
    %188 = vector.load %arg20[%c1_80, %c0_81, %c0_82] : memref<3x4x128xf32, #tpu.memory_space<vmem>>, vector<1x4x128xf32>
    %189 = vector.shape_cast %188 : vector<1x4x128xf32> to vector<4x128xf32>
    %190 = vector.shape_cast %181 : vector<4x128xf32> to vector<1x4x128xf32>
    tpu.vector_store %arg20[%c1_80, %c0_81, %c0_82], %190 {strides = array<i32>} : memref<3x4x128xf32, #tpu.memory_space<vmem>>, vector<1x4x128xf32>,
    %c2_83 = arith.constant 2 : index
    %c0_84 = arith.constant 0 : index
    %c0_85 = arith.constant 0 : index
    %191 = vector.load %arg20[%c2_83, %c0_84, %c0_85] : memref<3x4x128xf32, #tpu.memory_space<vmem>>, vector<1x4x128xf32>
    %192 = vector.shape_cast %191 : vector<1x4x128xf32> to vector<4x128xf32>
    %193 = vector.shape_cast %183 : vector<4x128xf32> to vector<1x4x128xf32>
    tpu.vector_store %arg20[%c2_83, %c0_84, %c0_85], %193 {strides = array<i32>} : memref<3x4x128xf32, #tpu.memory_space<vmem>>, vector<1x4x128xf32>,
    return
  }
  func.func @transform_0(%arg0: i32) -> (i32, i32) {
    %c0_i32 = arith.constant 0 : i32
    %c0_i32_0 = arith.constant 0 : i32
    return %c0_i32, %arg0 : i32, i32
  }
  func.func @transform_1(%arg0: i32) -> (i32, i32) {
    %c0_i32 = arith.constant 0 : i32
    %c0_i32_0 = arith.constant 0 : i32
    return %c0_i32, %arg0 : i32, i32
  }
  func.func @transform_2(%arg0: i32) -> (i32, i32) {
    %c0_i32 = arith.constant 0 : i32
    %c0_i32_0 = arith.constant 0 : i32
    return %c0_i32, %arg0 : i32, i32
  }
  func.func @transform_3(%arg0: i32) -> (i32, i32, i32) {
    %c0_i32 = arith.constant 0 : i32
    %c0_i32_0 = arith.constant 0 : i32
    %c0_i32_1 = arith.constant 0 : i32
    return %c0_i32, %c0_i32_0, %arg0 : i32, i32, i32
  }
  func.func @transform_4(%arg0: i32) -> (i32, i32) {
    %c0_i32 = arith.constant 0 : i32
    %c0_i32_0 = arith.constant 0 : i32
    return %c0_i32, %arg0 : i32, i32
  }
  func.func @transform_5(%arg0: i32) -> (i32, i32, i32) {
    %c0_i32 = arith.constant 0 : i32
    %c0_i32_0 = arith.constant 0 : i32
    %c0_i32_1 = arith.constant 0 : i32
    return %c0_i32, %c0_i32_0, %arg0 : i32, i32, i32
  }
  func.func @transform_6(%arg0: i32) -> (i32, i32) {
    %c0_i32 = arith.constant 0 : i32
    %c0_i32_0 = arith.constant 0 : i32
    %c0_i32_1 = arith.constant 0 : i32
    return %c0_i32, %c0_i32_0 : i32, i32
  }
  func.func @transform_7(%arg0: i32) -> (i32, i32) {
    %c0_i32 = arith.constant 0 : i32
    %c0_i32_0 = arith.constant 0 : i32
    %c0_i32_1 = arith.constant 0 : i32
    return %c0_i32, %c0_i32_0 : i32, i32
  }
  func.func @transform_8(%arg0: i32) -> (i32, i32) {
    %c0_i32 = arith.constant 0 : i32
    %c0_i32_0 = arith.constant 0 : i32
    %c0_i32_1 = arith.constant 0 : i32
    return %c0_i32, %c0_i32_0 : i32, i32
  }
  func.func @transform_9(%arg0: i32) -> (i32, i32) {
    %c0_i32 = arith.constant 0 : i32
    %c0_i32_0 = arith.constant 0 : i32
    %c0_i32_1 = arith.constant 0 : i32
    return %c0_i32, %c0_i32_0 : i32, i32
  }
  func.func @transform_10(%arg0: i32) -> (i32, i32) {
    %c0_i32 = arith.constant 0 : i32
    %c0_i32_0 = arith.constant 0 : i32
    %c0_i32_1 = arith.constant 0 : i32
    return %c0_i32, %c0_i32_0 : i32, i32
  }
  func.func @transform_11(%arg0: i32) -> (i32, i32) {
    %c0_i32 = arith.constant 0 : i32
    %c0_i32_0 = arith.constant 0 : i32
    %c0_i32_1 = arith.constant 0 : i32
    return %c0_i32, %c0_i32_0 : i32, i32
  }
  func.func @transform_12(%arg0: i32) -> (i32, i32) {
    %c0_i32 = arith.constant 0 : i32
    %c0_i32_0 = arith.constant 0 : i32
    %c0_i32_1 = arith.constant 0 : i32
    return %c0_i32, %c0_i32_0 : i32, i32
  }
  func.func @transform_13(%arg0: i32) -> (i32, i32) {
    %c0_i32 = arith.constant 0 : i32
    %c0_i32_0 = arith.constant 0 : i32
    %c0_i32_1 = arith.constant 0 : i32
    return %c0_i32, %c0_i32_0 : i32, i32
  }
  func.func @transform_14(%arg0: i32) -> (i32, i32) {
    %c0_i32 = arith.constant 0 : i32
    %c0_i32_0 = arith.constant 0 : i32
    %c0_i32_1 = arith.constant 0 : i32
    return %c0_i32, %c0_i32_0 : i32, i32
  }
  func.func @transform_15(%arg0: i32) -> (i32, i32) {
    %c0_i32 = arith.constant 0 : i32
    %c0_i32_0 = arith.constant 0 : i32
    %c0_i32_1 = arith.constant 0 : i32
    return %c0_i32, %c0_i32_0 : i32, i32
  }
  func.func @transform_16(%arg0: i32) -> (i32, i32) {
    %c0_i32 = arith.constant 0 : i32
    %c0_i32_0 = arith.constant 0 : i32
    %c0_i32_1 = arith.constant 0 : i32
    return %c0_i32, %c0_i32_0 : i32, i32
  }
  func.func @transform_17(%arg0: i32) -> (i32, i32) {
    %c0_i32 = arith.constant 0 : i32
    %c0_i32_0 = arith.constant 0 : i32
    %c0_i32_1 = arith.constant 0 : i32
    return %c0_i32, %c0_i32_0 : i32, i32
  }
  func.func @transform_18(%arg0: i32) -> (i32, i32) {
    %c0_i32 = arith.constant 0 : i32
    %c0_i32_0 = arith.constant 0 : i32
    return %c0_i32, %arg0 : i32, i32
  }
  func.func @transform_19(%arg0: i32) -> (i32, i32, i32) {
    %c0_i32 = arith.constant 0 : i32
    %c0_i32_0 = arith.constant 0 : i32
    %c0_i32_1 = arith.constant 0 : i32
    return %c0_i32, %c0_i32_0, %arg0 : i32, i32, i32
  }
}

</mosaic_0001>

<llo_original>
// kernel: custom-call
$region0: #{custom-call}
  %s0 = inlined_call_operand.vmem [shape: u32[64], index: 0, kind: output, shape index: {}]

// kernel: _lambda_.3
$region0: #{_lambda_.3}
  #allocation0 [shape = 'u32[]', space=smem, size = 0x4, offset = 0x4, fixed_abs, tag = 'smem constant byte address 0x4 - core index']
  #allocation1 [shape = 'u32[72,128]{1,0:T(1,128)}', space=vmem, size = 0x9000, scoped, tag = 'internal scratch']
  %s0 = inlined_call_operand.vmem [shape: f32[16,128], index: 0, kind: input, shape index: {}]
  %s1 = inlined_call_operand.vmem [shape: f32[16,128], index: 1, kind: input, shape index: {}]
  %s2 = inlined_call_operand.vmem [shape: f32[1,128], index: 2, kind: input, shape index: {}]
  %s3 = inlined_call_operand.vmem [shape: f32[3,4,128], index: 3, kind: input, shape index: {}]
  %s4 = inlined_call_operand.vmem [shape: f32[16,128], index: 4, kind: input, shape index: {}]
  %s5 = inlined_call_operand.vmem [shape: f32[3,4,128], index: 5, kind: input, shape index: {}]
  %s6 = inlined_call_operand.vmem [shape: f32[16,1], index: 6, kind: input, shape index: {}, may-alias: {6,16}]
  %s7 = inlined_call_operand.vmem [shape: f32[16,1], index: 7, kind: input, shape index: {}, may-alias: {7,17}]
  %s8 = inlined_call_operand.vmem [shape: f32[8,4], index: 8, kind: input, shape index: {}]
  %s9 = inlined_call_operand.vmem [shape: f32[64,24], index: 9, kind: input, shape index: {}]
  %s10 = inlined_call_operand.vmem [shape: f32[8,8], index: 10, kind: input, shape index: {}]
  %s11 = inlined_call_operand.vmem [shape: f32[64,1], index: 11, kind: input, shape index: {}]
  %s12 = inlined_call_operand.vmem [shape: f32[8,8], index: 12, kind: input, shape index: {}]
  %s13 = inlined_call_operand.vmem [shape: f32[16,72], index: 13, kind: input, shape index: {}]
  %s14 = inlined_call_operand.vmem [shape: f32[4,8], index: 14, kind: input, shape index: {}]
  %s15 = inlined_call_operand.vmem [shape: f32[16,1], index: 15, kind: input, shape index: {}]
  %s16 = inlined_call_operand.vmem [shape: f32[16,1], index: 16, kind: input, shape index: {}, may-alias: {6,16}]
  %s17 = inlined_call_operand.vmem [shape: f32[16,1], index: 17, kind: input, shape index: {}, may-alias: {7,17}]
  %s18 = inlined_call_operand.vmem [shape: f32[16,128], index: 18, kind: output, shape index: {0}]
  %s19 = inlined_call_operand.vmem [shape: f32[3,4,128], index: 19, kind: output, shape index: {1}]
  %20 = xla_tuple %s18, %s19
  %s21 = sld [smem:[#allocation0]]
  $region90: #{_lambda_.3} parent=0
    _
  %s23 = ssub.s32 1, %s21
  %s24 = scalar_select 0, %s23, %s21
  // Predicated region
  $region2: #{_lambda_.3} parent=0 // pred_check
    _
  $region3: #{_lambda_.3} parent=0 // pred_check_branch
    %26 = sbr.rel (0) target = $region5
  $region4: #{_lambda_.3} parent=0 // pred_region
    _
  $region5: #{_lambda_.3} parent=0 // pred_fallthru
    _
  // Predicated region
  $region6: #{_lambda_.3} parent=0 // pred_check
    _
  $region7: #{_lambda_.3} parent=0 // pred_check_branch
    %28 = sbr.rel (0) target = $region9
  $region8: #{_lambda_.3} parent=0 // pred_region
    _
  $region9: #{_lambda_.3} parent=0 // pred_fallthru
    _
  // Predicated region
  $region10: #{_lambda_.3} parent=0 // pred_check
    _
  $region11: #{_lambda_.3} parent=0 // pred_check_branch
    %30 = sbr.rel (0) target = $region13
  $region12: #{_lambda_.3} parent=0 // pred_region
    _
  $region13: #{_lambda_.3} parent=0 // pred_fallthru
    _
  // Predicated region
  $region14: #{_lambda_.3} parent=0 // pred_check
    _
  $region15: #{_lambda_.3} parent=0 // pred_check_branch
    %32 = sbr.rel (0) target = $region17
  $region16: #{_lambda_.3} parent=0 // pred_region
    _
  $region17: #{_lambda_.3} parent=0 // pred_fallthru
    _
  // Predicated region
  $region18: #{_lambda_.3} parent=0 // pred_check
    _
  $region19: #{_lambda_.3} parent=0 // pred_check_branch
    %34 = sbr.rel (0) target = $region21
  $region20: #{_lambda_.3} parent=0 // pred_region
    _
  $region21: #{_lambda_.3} parent=0 // pred_fallthru
    _
  // Predicated region
  $region22: #{_lambda_.3} parent=0 // pred_check
    _
  $region23: #{_lambda_.3} parent=0 // pred_check_branch
    %36 = sbr.rel (0) target = $region25
  $region24: #{_lambda_.3} parent=0 // pred_region
    _
  $region25: #{_lambda_.3} parent=0 // pred_fallthru
    _
  // Predicated region
  $region26: #{_lambda_.3} parent=0 // pred_check
    _
  $region27: #{_lambda_.3} parent=0 // pred_check_branch
    %38 = sbr.rel (0) target = $region29
  $region28: #{_lambda_.3} parent=0 // pred_region
    _
  $region29: #{_lambda_.3} parent=0 // pred_fallthru
    _
  // Predicated region
  $region30: #{_lambda_.3} parent=0 // pred_check
    _
  $region31: #{_lambda_.3} parent=0 // pred_check_branch
    %40 = sbr.rel (0) target = $region33
  $region32: #{_lambda_.3} parent=0 // pred_region
    _
  $region33: #{_lambda_.3} parent=0 // pred_fallthru
    _
  // Predicated region
  $region34: #{_lambda_.3} parent=0 // pred_check
    _
  $region35: #{_lambda_.3} parent=0 // pred_check_branch
    %42 = sbr.rel (0) target = $region37
  $region36: #{_lambda_.3} parent=0 // pred_region
    _
  $region37: #{_lambda_.3} parent=0 // pred_fallthru
    _
  // Predicated region
  $region38: #{_lambda_.3} parent=0 // pred_check
    _
  $region39: #{_lambda_.3} parent=0 // pred_check_branch
    %44 = sbr.rel (0) target = $region41
  $region40: #{_lambda_.3} parent=0 // pred_region
    _
  $region41: #{_lambda_.3} parent=0 // pred_fallthru
    _
  // Predicated region
  $region42: #{_lambda_.3} parent=0 // pred_check
    _
  $region43: #{_lambda_.3} parent=0 // pred_check_branch
    %46 = sbr.rel (0) target = $region45
  $region44: #{_lambda_.3} parent=0 // pred_region
    _
  $region45: #{_lambda_.3} parent=0 // pred_fallthru
    _
  // Predicated region
  $region46: #{_lambda_.3} parent=0 // pred_check
    _
  $region47: #{_lambda_.3} parent=0 // pred_check_branch
    %48 = sbr.rel (0) target = $region49
  $region48: #{_lambda_.3} parent=0 // pred_region
    _
  $region49: #{_lambda_.3} parent=0 // pred_fallthru
    _
  // Predicated region
  $region50: #{_lambda_.3} parent=0 // pred_check
    _
  $region51: #{_lambda_.3} parent=0 // pred_check_branch
    %50 = sbr.rel (0) target = $region53
  $region52: #{_lambda_.3} parent=0 // pred_region
    _
  $region53: #{_lambda_.3} parent=0 // pred_fallthru
    _
  // Predicated region
  $region54: #{_lambda_.3} parent=0 // pred_check
    _
  $region55: #{_lambda_.3} parent=0 // pred_check_branch
    %52 = sbr.rel (0) target = $region57
  $region56: #{_lambda_.3} parent=0 // pred_region
    _
  $region57: #{_lambda_.3} parent=0 // pred_fallthru
    _
  // Predicated region
  $region58: #{_lambda_.3} parent=0 // pred_check
    _
  $region59: #{_lambda_.3} parent=0 // pred_check_branch
    %54 = sbr.rel (0) target = $region61
  $region60: #{_lambda_.3} parent=0 // pred_region
    _
  $region61: #{_lambda_.3} parent=0 // pred_fallthru
    _
  // Predicated region
  $region62: #{_lambda_.3} parent=0 // pred_check
    _
  $region63: #{_lambda_.3} parent=0 // pred_check_branch
    %56 = sbr.rel (0) target = $region65
  $region64: #{_lambda_.3} parent=0 // pred_region
    _
  $region65: #{_lambda_.3} parent=0 // pred_fallthru
    _
  // Predicated region
  $region66: #{_lambda_.3} parent=0 // pred_check
    _
  $region67: #{_lambda_.3} parent=0 // pred_check_branch
    %58 = sbr.rel (0) target = $region69
  $region68: #{_lambda_.3} parent=0 // pred_region
    _
  $region69: #{_lambda_.3} parent=0 // pred_fallthru
    _
  // Predicated region
  $region70: #{_lambda_.3} parent=0 // pred_check
    _
  $region71: #{_lambda_.3} parent=0 // pred_check_branch
    %60 = sbr.rel (0) target = $region73
  $region72: #{_lambda_.3} parent=0 // pred_region
    _
  $region73: #{_lambda_.3} parent=0 // pred_fallthru
    _
  %v61 = vld [vmem:[%s0] sm:$0xff]
  %v62 = vld [vmem:[%s0 + $0x8] sm:$0xff]
  %v63 = vld [vmem:[%s1] sm:$0xff]
  %v64 = vld [vmem:[%s1 + $0x8] sm:$0xff]
  %v65 = vld [vmem:[%s2] sm:$0x1]
  %vm66 = vcmp.gt.f32.partialorder %v65, 0.5
  %v67 = vadd.f32 %v61, %v63
  %v68 = vadd.f32 %v62, %v64
  %v69 = vmul.f32 %v67, 0.5
  %v70 = vmul.f32 %v68, 0.5
  %v71 = vsel %vm66, 1, 0
  %v72 = vperm.slane %v71, 0
  %vm73 = vcmp.eq.s32.totalorder %v72, 1
  %v74 = vsel %vm73, %v69, %v61
  %v75 = vsel %vm73, %v70, %v62
  %v76 = vld [vmem:[%s4] sm:$0xff]
  %v77 = vld [vmem:[%s4 + $0x8] sm:$0xff]
  %v78 = vadd.f32 %v76, %v74
  %v79 = vadd.f32 %v77, %v75
  %v80 = vld [vmem:[%s5] sm:$0xf]
  %v81 = vld [vmem:[%s3] sm:$0xf]
  %v82 = vadd.f32 %v80, %v81
  %s83 = scalar_lea.vmem %s5, 4
  %v84 = vld [vmem:[%s83] sm:$0xf]
  %s85 = scalar_lea.vmem %s3, 4
  %v86 = vld [vmem:[%s85] sm:$0xf]
  %v87 = vadd.f32 %v84, %v86
  %s88 = scalar_lea.vmem %s5, 8
  %v89 = vld [vmem:[%s88] sm:$0xf]
  %s90 = scalar_lea.vmem %s3, 8
  %v91 = vld [vmem:[%s90] sm:$0xf]
  %v92 = vadd.f32 %v89, %v91
  %v93 = vld [vmem:[%s6] sm:$0xff]
  %v94 = vld [vmem:[%s6 + $0x8] sm:$0xff]
  %v95 = vld [vmem:[%s7] sm:$0xff]
  %v96 = vld [vmem:[%s7 + $0x8] sm:$0xff]
  %v97 = vadd.f32 %v78, %v79
  %v98 = vrot.slane %v97, 4
  %v99 = vadd.f32 %v97, %v98
  %v100 = vrot.slane %v99, 2
  %v101 = vadd.f32 %v99, %v100
  %v102 = vrot.slane %v101, 1
  %v103 = vadd.f32 %v101, %v102
  %v104 = vrcp.pop 16.0
  %v105 = vmul.f32 16.0, %v104
  %v106 = vsub.f32 1.0, %v105
  %v107 = vmul.f32 %v104, %v106
  %v108 = vadd.f32 %v104, %v107
  %vm109 = vweird.f32 %v104
  %v110 = vsel %vm109, %v104, %v108
  %v111 = vmul.f32 %v103, %v110
  %v112 = vsub.f32 %v78, %v111
  %v113 = vsub.f32 %v79, %v111
  %v114 = vmul.f32 %v112, %v112
  %v115 = vmul.f32 %v113, %v113
  %v116 = vadd.f32 %v114, %v115
  %v117 = vrot.slane %v116, 4
  %v118 = vadd.f32 %v116, %v117
  %v119 = vrot.slane %v118, 2
  %v120 = vadd.f32 %v118, %v119
  %v121 = vrot.slane %v120, 1
  %v122 = vadd.f32 %v120, %v121
  %v123 = vmul.f32 %v122, %v110
  %v124 = vadd.f32 %v123, 1e-05
  %v125 = vrsqrt.pop %v124
  %v126 = vmul.f32 %v125, %v124
  %v127 = vmul.f32 %v126, %v125
  %v128 = vmul.f32 0.5, %v127
  %v129 = vsub.f32 1.5, %v128
  %v130 = vmul.f32 %v125, %v129
  %vm131 = vweird.f32 %v124
  %vm132 = vweird.f32 %v125
  %vm133 = vmor %vm131, %vm132
  %v134 = vsel %vm133, %v125, %v130
  %v135 = vmul.f32 %v112, %v134
  %v136 = vmul.f32 %v113, %v134
  %138 = vset.pattern.permute.xlu0 0
  %139 = vperm.xlu0 %138, %v93
  %v140 = vpop.permute.xlu0 %139
  %143 = vset.pattern.permute.xlu0 0
  %144 = vperm.xlu0 %143, %v94
  %v145 = vpop.permute.xlu0 %144
  %v147 = vmul.f32 %v135, %v140
  %v148 = vmul.f32 %v136, %v145
  %150 = vset.pattern.permute.xlu0 0
  %151 = vperm.xlu0 %150, %v95
  %v152 = vpop.permute.xlu0 %151
  %155 = vset.pattern.permute.xlu0 0
  %156 = vperm.xlu0 %155, %v96
  %v157 = vpop.permute.xlu0 %156
  %v159 = vadd.f32 %v147, %v152
  %v160 = vadd.f32 %v148, %v157
  %v161 = vmul.f32 %v82, %v82
  %v162 = vmul.f32 %v87, %v87
  %v163 = vadd.f32 %v161, %v162
  %v164 = vmul.f32 %v92, %v92
  %v165 = vadd.f32 %v163, %v164
  %v166 = vmax.f32 %v165, 1e-08
  %vm167 = vcmask 1043456
  %v168 = vsel %vm167, %v166, 0.0
  %v169 = vrot.slane %v168, 4
  %v170 = vadd.f32 %v168, %v169
  %v171 = vrot.slane %v170, 2
  %v172 = vadd.f32 %v170, %v171
  %v173 = vrot.slane %v172, 1
  %v174 = vadd.f32 %v172, %v173
  %v175 = vrcp.pop 4.0
  %v176 = vmul.f32 4.0, %v175
  %v177 = vsub.f32 1.0, %v176
  %v178 = vmul.f32 %v175, %v177
  %v179 = vadd.f32 %v175, %v178
  %vm180 = vweird.f32 %v175
  %v181 = vsel %vm180, %v175, %v179
  %v182 = vmul.f32 %v174, %v181
  %v183 = vrsqrt.pop %v182
  %v184 = vmul.f32 %v183, %v182
  %v185 = vmul.f32 %v184, %v183
  %v186 = vmul.f32 0.5, %v185
  %v187 = vsub.f32 1.5, %v186
  %v188 = vmul.f32 %v183, %v187
  %vm189 = vweird.f32 %v182
  %vm190 = vweird.f32 %v183
  %vm191 = vmor %vm189, %vm190
  %v192 = vsel %vm191, %v183, %v188
  %v193 = vmul.f32 %v82, %v192
  %v194 = vmul.f32 %v87, %v192
  %v195 = vmul.f32 %v92, %v192
  %v196 = vld [vmem:[%s8] sm:$0xff]
  %v197 = vld [vmem:[%s9] sm:$0xff]
  %v198 = vld [vmem:[%s9 + $0x8] sm:$0xff]
  %v199 = vld [vmem:[%s9 + $0x10] sm:$0xff]
  %v200 = vld [vmem:[%s9 + $0x18] sm:$0xff]
  %v201 = vld [vmem:[%s9 + $0x20] sm:$0xff]
  %v202 = vld [vmem:[%s9 + $0x28] sm:$0xff]
  %v203 = vld [vmem:[%s9 + $0x30] sm:$0xff]
  %v204 = vld [vmem:[%s9 + $0x38] sm:$0xff]
  %v205 = vld [vmem:[%s10] sm:$0xff]
  %v206 = vld [vmem:[%s11] sm:$0xff]
  %v207 = vld [vmem:[%s11 + $0x8] sm:$0xff]
  %v208 = vld [vmem:[%s11 + $0x10] sm:$0xff]
  %v209 = vld [vmem:[%s11 + $0x18] sm:$0xff]
  %v210 = vld [vmem:[%s11 + $0x20] sm:$0xff]
  %v211 = vld [vmem:[%s11 + $0x28] sm:$0xff]
  %v212 = vld [vmem:[%s11 + $0x30] sm:$0xff]
  %v213 = vld [vmem:[%s11 + $0x38] sm:$0xff]
  %vm214 = vcmask 31744
  %v216 = vsel %vm214, %v196, 0
  %v219 = vsel %vm167, %v193, 0
  %v222 = vsel %vm167, %v194, 0
  %v225 = vsel %vm167, %v195, 0
  %227 = vmatpush.msra.mxu0 0.0
  %228 = vmatpush.msra.mxu0 0.0
  %229 = vmatpush.msra.mxu0 0.0
  %230 = vmatpush.msra.mxu0 0.0
  %231 = vmatpush.msra.mxu0 0.0
  %232 = vmatpush.msra.mxu0 0.0
  %233 = vmatpush.msra.mxu0 0.0
  %234 = vmatpush.msra.mxu0 0.0
  %235 = vmatpush.msra.mxu0 0.0
  %236 = vmatpush.msra.mxu0 0.0
  %237 = vmatpush.msra.mxu0 0.0
  %238 = vmatpush.msra.mxu0 0.0
  %239 = vmatpush.msra.mxu0 0.0
  %240 = vmatpush.msra.mxu0 0.0
  %241 = vmatpush.msra.mxu0 0.0
  %242 = vmatpush.msra.mxu0 %v219
  %243 = vmatmul.f32.gmra.mxu0 %v216
  %v244 = vpop.f32.mrf.mxu0
  %v245 = vadd.f32 0.0, %v244
  %246 = vdwg.mxu0
  %247 = vmatpush.msra.mxu0 0.0
  %248 = vmatpush.msra.mxu0 0.0
  %249 = vmatpush.msra.mxu0 0.0
  %250 = vmatpush.msra.mxu0 0.0
  %251 = vmatpush.msra.mxu0 0.0
  %252 = vmatpush.msra.mxu0 0.0
  %253 = vmatpush.msra.mxu0 0.0
  %254 = vmatpush.msra.mxu0 0.0
  %255 = vmatpush.msra.mxu0 0.0
  %256 = vmatpush.msra.mxu0 0.0
  %257 = vmatpush.msra.mxu0 0.0
  %258 = vmatpush.msra.mxu0 0.0
  %259 = vmatpush.msra.mxu0 0.0
  %260 = vmatpush.msra.mxu0 0.0
  %261 = vmatpush.msra.mxu0 0.0
  %262 = vmatpush.msra.mxu0 %v222
  %263 = vmatmul.f32.gmra.mxu0 %v216
  %v264 = vpop.f32.mrf.mxu0
  %v265 = vadd.f32 0.0, %v264
  %266 = vdwg.mxu0
  %267 = vmatpush.msra.mxu0 0.0
  %268 = vmatpush.msra.mxu0 0.0
  %269 = vmatpush.msra.mxu0 0.0
  %270 = vmatpush.msra.mxu0 0.0
  %271 = vmatpush.msra.mxu0 0.0
  %272 = vmatpush.msra.mxu0 0.0
  %273 = vmatpush.msra.mxu0 0.0
  %274 = vmatpush.msra.mxu0 0.0
  %275 = vmatpush.msra.mxu0 0.0
  %276 = vmatpush.msra.mxu0 0.0
  %277 = vmatpush.msra.mxu0 0.0
  %278 = vmatpush.msra.mxu0 0.0
  %279 = vmatpush.msra.mxu0 0.0
  %280 = vmatpush.msra.mxu0 0.0
  %281 = vmatpush.msra.mxu0 0.0
  %282 = vmatpush.msra.mxu0 %v225
  %283 = vmatmul.f32.gmra.mxu0 %v216
  %v284 = vpop.f32.mrf.mxu0
  %v285 = vadd.f32 0.0, %v284
  %286 = vdwg.mxu0
  %v287 = vmul.f32 %v245, %v245
  %v288 = vmul.f32 %v265, %v265
  %v289 = vadd.f32 %v287, %v288
  %v290 = vmul.f32 %v285, %v285
  %v291 = vadd.f32 %v289, %v290
  %v292 = vmax.f32 %v291, 1e-08
  %v293 = vrsqrt.pop %v292
  %v294 = vmul.f32 %v293, %v292
  %v295 = vmul.f32 %v294, %v293
  %v296 = vmul.f32 0.5, %v295
  %v297 = vsub.f32 1.5, %v296
  %v298 = vmul.f32 %v293, %v297
  %v299 = vmul.f32 %v292, %v298
  %vm300 = vcmp.eq.f32.partialorder %v292, inf
  %v301 = vsel %vm300, %v292, %v299
  %vm302 = vcmp.eq.f32.partialorder %v292, 0.0
  %v303 = vand.u32 %v292, 2147483648
  %v304 = vsel %vm302, %v303, %v301
  %306 = vset.pattern.permute.xlu0 0
  %307 = vperm.xlu0 %306, %v206
  %v308 = vpop.permute.xlu0 %307
  %311 = vset.pattern.permute.xlu0 0
  %312 = vperm.xlu0 %311, %v207
  %v313 = vpop.permute.xlu0 %312
  %316 = vset.pattern.permute.xlu0 0
  %317 = vperm.xlu0 %316, %v208
  %v318 = vpop.permute.xlu0 %317
  %321 = vset.pattern.permute.xlu0 0
  %322 = vperm.xlu0 %321, %v209
  %v323 = vpop.permute.xlu0 %322
  %326 = vset.pattern.permute.xlu0 0
  %327 = vperm.xlu0 %326, %v210
  %v328 = vpop.permute.xlu0 %327
  %331 = vset.pattern.permute.xlu0 0
  %332 = vperm.xlu0 %331, %v211
  %v333 = vpop.permute.xlu0 %332
  %336 = vset.pattern.permute.xlu0 0
  %337 = vperm.xlu0 %336, %v212
  %v338 = vpop.permute.xlu0 %337
  %341 = vset.pattern.permute.xlu0 0
  %342 = vperm.xlu0 %341, %v213
  %v343 = vpop.permute.xlu0 %342
  %vm345 = vcmask 195584
  %v347 = vsel %vm345, %v197, 0
  %v350 = vsel %vm345, %v198, 0
  %v353 = vsel %vm345, %v199, 0
  %v356 = vsel %vm345, %v200, 0
  %v359 = vsel %vm345, %v201, 0
  %v362 = vsel %vm345, %v202, 0
  %v365 = vsel %vm345, %v203, 0
  %v368 = vsel %vm345, %v204, 0
  %370 = vmatpush.msra.mxu0 0.0
  %371 = vmatpush.msra.mxu0 0.0
  %372 = vmatpush.msra.mxu0 0.0
  %373 = vmatpush.msra.mxu0 0.0
  %374 = vmatpush.msra.mxu0 0.0
  %375 = vmatpush.msra.mxu0 0.0
  %376 = vmatpush.msra.mxu0 0.0
  %377 = vmatpush.msra.mxu0 0.0
  %378 = vmatpush.msra.mxu0 0.0
  %379 = vmatpush.msra.mxu0 0.0
  %380 = vmatpush.msra.mxu0 0.0
  %381 = vmatpush.msra.mxu0 0.0
  %382 = vmatpush.msra.mxu0 0.0
  %383 = vmatpush.msra.mxu0 %v304
  %384 = vmatpush.msra.mxu0 %v160
  %385 = vmatpush.msra.mxu0 %v159
  %386 = vmatmul.f32.gmra.mxu0 %v347
  %v387 = vpop.f32.mrf.mxu0
  %v388 = vadd.f32 %v308, %v387
  %389 = vmatmul.f32.gmra.mxu0 %v350
  %v390 = vpop.f32.mrf.mxu0
  %v391 = vadd.f32 %v313, %v390
  %392 = vmatmul.f32.gmra.mxu0 %v353
  %v393 = vpop.f32.mrf.mxu0
  %v394 = vadd.f32 %v318, %v393
  %395 = vmatmul.f32.gmra.mxu0 %v356
  %v396 = vpop.f32.mrf.mxu0
  %v397 = vadd.f32 %v323, %v396
  %398 = vmatmul.f32.gmra.mxu0 %v359
  %v399 = vpop.f32.mrf.mxu0
  %v400 = vadd.f32 %v328, %v399
  %401 = vmatmul.f32.gmra.mxu0 %v362
  %v402 = vpop.f32.mrf.mxu0
  %v403 = vadd.f32 %v333, %v402
  %404 = vmatmul.f32.gmra.mxu0 %v365
  %v405 = vpop.f32.mrf.mxu0
  %v406 = vadd.f32 %v338, %v405
  %407 = vmatmul.f32.gmra.mxu0 %v368
  %v408 = vpop.f32.mrf.mxu0
  %v409 = vadd.f32 %v343, %v408
  %410 = vdwg.mxu0
  %vm411 = vcmask 64512
  %v413 = vsel %vm411, %v205, 0
  %415 = vmatpush.msra.mxu0 0.0
  %416 = vmatpush.msra.mxu0 0.0
  %417 = vmatpush.msra.mxu0 0.0
  %418 = vmatpush.msra.mxu0 0.0
  %419 = vmatpush.msra.mxu0 0.0
  %420 = vmatpush.msra.mxu0 0.0
  %421 = vmatpush.msra.mxu0 0.0
  %422 = vmatpush.msra.mxu0 0.0
  %423 = vmatpush.msra.mxu0 0.0
  %424 = vmatpush.msra.mxu0 0.0
  %425 = vmatpush.msra.mxu0 0.0
  %426 = vmatpush.msra.mxu0 0.0
  %427 = vmatpush.msra.mxu0 0.0
  %428 = vmatpush.msra.mxu0 0.0
  %429 = vmatpush.msra.mxu0 0.0
  %430 = vmatpush.msra.mxu0 %v245
  %431 = vmatmul.f32.gmra.mxu0 %v413
  %v432 = vpop.f32.mrf.mxu0
  %v433 = vadd.f32 0.0, %v432
  %434 = vdwg.mxu0
  %435 = vmatpush.msra.mxu0 0.0
  %436 = vmatpush.msra.mxu0 0.0
  %437 = vmatpush.msra.mxu0 0.0
  %438 = vmatpush.msra.mxu0 0.0
  %439 = vmatpush.msra.mxu0 0.0
  %440 = vmatpush.msra.mxu0 0.0
  %441 = vmatpush.msra.mxu0 0.0
  %442 = vmatpush.msra.mxu0 0.0
  %443 = vmatpush.msra.mxu0 0.0
  %444 = vmatpush.msra.mxu0 0.0
  %445 = vmatpush.msra.mxu0 0.0
  %446 = vmatpush.msra.mxu0 0.0
  %447 = vmatpush.msra.mxu0 0.0
  %448 = vmatpush.msra.mxu0 0.0
  %449 = vmatpush.msra.mxu0 0.0
  %450 = vmatpush.msra.mxu0 %v265
  %451 = vmatmul.f32.gmra.mxu0 %v413
  %v452 = vpop.f32.mrf.mxu0
  %v453 = vadd.f32 0.0, %v452
  %454 = vdwg.mxu0
  %455 = vmatpush.msra.mxu0 0.0
  %456 = vmatpush.msra.mxu0 0.0
  %457 = vmatpush.msra.mxu0 0.0
  %458 = vmatpush.msra.mxu0 0.0
  %459 = vmatpush.msra.mxu0 0.0
  %460 = vmatpush.msra.mxu0 0.0
  %461 = vmatpush.msra.mxu0 0.0
  %462 = vmatpush.msra.mxu0 0.0
  %463 = vmatpush.msra.mxu0 0.0
  %464 = vmatpush.msra.mxu0 0.0
  %465 = vmatpush.msra.mxu0 0.0
  %466 = vmatpush.msra.mxu0 0.0
  %467 = vmatpush.msra.mxu0 0.0
  %468 = vmatpush.msra.mxu0 0.0
  %469 = vmatpush.msra.mxu0 0.0
  %470 = vmatpush.msra.mxu0 %v285
  %471 = vmatmul.f32.gmra.mxu0 %v413
  %v472 = vpop.f32.mrf.mxu0
  %v473 = vadd.f32 0.0, %v472
  %474 = vdwg.mxu0
  %v475 = vmul.f32 %v433, %v433
  %v476 = vmul.f32 %v453, %v453
  %v477 = vadd.f32 %v475, %v476
  %v478 = vmul.f32 %v473, %v473
  %v479 = vadd.f32 %v477, %v478
  %v480 = vmax.f32 %v479, 1e-08
  %v481 = vrsqrt.pop %v480
  %v482 = vmul.f32 %v481, %v480
  %v483 = vmul.f32 %v482, %v481
  %v484 = vmul.f32 0.5, %v483
  %v485 = vsub.f32 1.5, %v484
  %v486 = vmul.f32 %v481, %v485
  %v487 = vmul.f32 %v480, %v486
  %vm488 = vcmp.eq.f32.partialorder %v480, inf
  %v489 = vsel %vm488, %v480, %v487
  %vm490 = vcmp.eq.f32.partialorder %v480, 0.0
  %v491 = vand.u32 %v480, 2147483648
  %v492 = vsel %vm490, %v491, %v489
  %v493 = vxor.u32 %v492, 2147483648
  %v494 = vmul.f32 %v493, 1.442695
  %v495 = vpow.pop %v494
  %v496 = vadd.f32 %v495, 1.0
  %v497 = vrcp.pop %v496
  %v498 = vmul.f32 %v496, %v497
  %v499 = vsub.f32 1.0, %v498
  %v500 = vmul.f32 %v497, %v499
  %v501 = vadd.f32 %v497, %v500
  %vm502 = vweird.f32 %v496
  %vm503 = vweird.f32 %v497
  %vm504 = vmor %vm502, %vm503
  %v505 = vsel %vm504, %v497, %v501
  %v506 = vand.u32 2147483647, %v496
  %vm507 = vcmp.eq.f32.partialorder %v506, 8.507059e+37
  %v508 = vand.u32 %v496, 2147483648
  %v509 = vor.u32 1.1754944e-38, %v508
  %v510 = vsel %vm507, %v509, %v505
  %v511 = vmul.f32 1.0, %v510
  %v512 = vmul.f32 %v433, %v511
  %v513 = vmul.f32 %v453, %v511
  %v514 = vmul.f32 %v473, %v511
  %v515 = vmax.f32 %v388, 0.0
  %v516 = vmax.f32 %v391, 0.0
  %v517 = vmax.f32 %v394, 0.0
  %v518 = vmax.f32 %v397, 0.0
  %v519 = vmax.f32 %v400, 0.0
  %v520 = vmax.f32 %v403, 0.0
  %v521 = vmax.f32 %v406, 0.0
  %v522 = vmax.f32 %v409, 0.0
  %v523 = vld [vmem:[%s12] sm:$0xff]
  %v524 = vld [vmem:[%s13] sm:$0xff]
  %v525 = vld [vmem:[%s13 + $0x8] sm:$0xff]
  %v526 = vld [vmem:[%s14] sm:$0xf]
  %v527 = vld [vmem:[%s15] sm:$0xff]
  %v528 = vld [vmem:[%s15 + $0x8] sm:$0xff]
  %v530 = vsel %vm411, %v523, 0
  %532 = vmatpush.msra.mxu0 0.0
  %533 = vmatpush.msra.mxu0 0.0
  %534 = vmatpush.msra.mxu0 0.0
  %535 = vmatpush.msra.mxu0 0.0
  %536 = vmatpush.msra.mxu0 0.0
  %537 = vmatpush.msra.mxu0 0.0
  %538 = vmatpush.msra.mxu0 0.0
  %539 = vmatpush.msra.mxu0 0.0
  %540 = vmatpush.msra.mxu0 0.0
  %541 = vmatpush.msra.mxu0 0.0
  %542 = vmatpush.msra.mxu0 0.0
  %543 = vmatpush.msra.mxu0 0.0
  %544 = vmatpush.msra.mxu0 0.0
  %545 = vmatpush.msra.mxu0 0.0
  %546 = vmatpush.msra.mxu0 0.0
  %547 = vmatpush.msra.mxu0 %v512
  %548 = vmatmul.f32.gmra.mxu0 %v530
  %v549 = vpop.f32.mrf.mxu0
  %v550 = vadd.f32 0.0, %v549
  %551 = vdwg.mxu0
  %552 = vmatpush.msra.mxu0 0.0
  %553 = vmatpush.msra.mxu0 0.0
  %554 = vmatpush.msra.mxu0 0.0
  %555 = vmatpush.msra.mxu0 0.0
  %556 = vmatpush.msra.mxu0 0.0
  %557 = vmatpush.msra.mxu0 0.0
  %558 = vmatpush.msra.mxu0 0.0
  %559 = vmatpush.msra.mxu0 0.0
  %560 = vmatpush.msra.mxu0 0.0
  %561 = vmatpush.msra.mxu0 0.0
  %562 = vmatpush.msra.mxu0 0.0
  %563 = vmatpush.msra.mxu0 0.0
  %564 = vmatpush.msra.mxu0 0.0
  %565 = vmatpush.msra.mxu0 0.0
  %566 = vmatpush.msra.mxu0 0.0
  %567 = vmatpush.msra.mxu0 %v513
  %568 = vmatmul.f32.gmra.mxu0 %v530
  %v569 = vpop.f32.mrf.mxu0
  %v570 = vadd.f32 0.0, %v569
  %571 = vdwg.mxu0
  %572 = vmatpush.msra.mxu0 0.0
  %573 = vmatpush.msra.mxu0 0.0
  %574 = vmatpush.msra.mxu0 0.0
  %575 = vmatpush.msra.mxu0 0.0
  %576 = vmatpush.msra.mxu0 0.0
  %577 = vmatpush.msra.mxu0 0.0
  %578 = vmatpush.msra.mxu0 0.0
  %579 = vmatpush.msra.mxu0 0.0
  %580 = vmatpush.msra.mxu0 0.0
  %581 = vmatpush.msra.mxu0 0.0
  %582 = vmatpush.msra.mxu0 0.0
  %583 = vmatpush.msra.mxu0 0.0
  %584 = vmatpush.msra.mxu0 0.0
  %585 = vmatpush.msra.mxu0 0.0
  %586 = vmatpush.msra.mxu0 0.0
  %587 = vmatpush.msra.mxu0 %v514
  %588 = vmatmul.f32.gmra.mxu0 %v530
  %v589 = vpop.f32.mrf.mxu0
  %v590 = vadd.f32 0.0, %v589
  %591 = vdwg.mxu0
  %v592 = vmul.f32 %v550, %v550
  %v593 = vmul.f32 %v570, %v570
  %v594 = vadd.f32 %v592, %v593
  %v595 = vmul.f32 %v590, %v590
  %v596 = vadd.f32 %v594, %v595
  %v597 = vmax.f32 %v596, 1e-08
  %v598 = vrsqrt.pop %v597
  %v599 = vmul.f32 %v598, %v597
  %v600 = vmul.f32 %v599, %v598
  %v601 = vmul.f32 0.5, %v600
  %v602 = vsub.f32 1.5, %v601
  %v603 = vmul.f32 %v598, %v602
  %v604 = vmul.f32 %v597, %v603
  %vm605 = vcmp.eq.f32.partialorder %v597, inf
  %v606 = vsel %vm605, %v597, %v604
  %vm607 = vcmp.eq.f32.partialorder %v597, 0.0
  %v608 = vand.u32 %v597, 2147483648
  %v609 = vsel %vm607, %v608, %v606
  %611 = vset.pattern.permute.xlu0 0
  %612 = vperm.xlu0 %611, %v527
  %v613 = vpop.permute.xlu0 %612
  %616 = vset.pattern.permute.xlu0 0
  %617 = vperm.xlu0 %616, %v528
  %v618 = vpop.permute.xlu0 %617
  %vm620 = vcmask 588800
  %v622 = vsel %vm620, %v524, 0
  %v625 = vsel %vm620, %v525, 0
  %627 = vmatpush.msra.mxu0 0.0
  %628 = vmatpush.msra.mxu0 0.0
  %629 = vmatpush.msra.mxu0 0.0
  %630 = vmatpush.msra.mxu0 0.0
  %631 = vmatpush.msra.mxu0 0.0
  %632 = vmatpush.msra.mxu0 0.0
  %633 = vmatpush.msra.mxu0 0.0
  %634 = vmatpush.msra.mxu0 %v609
  %635 = vmatpush.msra.mxu0 %v522
  %636 = vmatpush.msra.mxu0 %v521
  %637 = vmatpush.msra.mxu0 %v520
  %638 = vmatpush.msra.mxu0 %v519
  %639 = vmatpush.msra.mxu0 %v518
  %640 = vmatpush.msra.mxu0 %v517
  %641 = vmatpush.msra.mxu0 %v516
  %642 = vmatpush.msra.mxu0 %v515
  %643 = vmatmul.f32.gmra.mxu0 %v622
  %v644 = vpop.f32.mrf.mxu0
  %v645 = vadd.f32 %v613, %v644
  %646 = vmatmul.f32.gmra.mxu0 %v625
  %v647 = vpop.f32.mrf.mxu0
  %v648 = vadd.f32 %v618, %v647
  %649 = vdwg.mxu0
  %v651 = vsel %vm411, %v526, 0
  %653 = vmatpush.msra.mxu0 0.0
  %654 = vmatpush.msra.mxu0 0.0
  %655 = vmatpush.msra.mxu0 0.0
  %656 = vmatpush.msra.mxu0 0.0
  %657 = vmatpush.msra.mxu0 0.0
  %658 = vmatpush.msra.mxu0 0.0
  %659 = vmatpush.msra.mxu0 0.0
  %660 = vmatpush.msra.mxu0 0.0
  %661 = vmatpush.msra.mxu0 0.0
  %662 = vmatpush.msra.mxu0 0.0
  %663 = vmatpush.msra.mxu0 0.0
  %664 = vmatpush.msra.mxu0 0.0
  %665 = vmatpush.msra.mxu0 0.0
  %666 = vmatpush.msra.mxu0 0.0
  %667 = vmatpush.msra.mxu0 0.0
  %668 = vmatpush.msra.mxu0 %v550
  %669 = vmatmul.f32.gmra.mxu0 %v651
  %v670 = vpop.f32.mrf.mxu0
  %v671 = vadd.f32 0.0, %v670
  %672 = vdwg.mxu0
  %673 = vmatpush.msra.mxu0 0.0
  %674 = vmatpush.msra.mxu0 0.0
  %675 = vmatpush.msra.mxu0 0.0
  %676 = vmatpush.msra.mxu0 0.0
  %677 = vmatpush.msra.mxu0 0.0
  %678 = vmatpush.msra.mxu0 0.0
  %679 = vmatpush.msra.mxu0 0.0
  %680 = vmatpush.msra.mxu0 0.0
  %681 = vmatpush.msra.mxu0 0.0
  %682 = vmatpush.msra.mxu0 0.0
  %683 = vmatpush.msra.mxu0 0.0
  %684 = vmatpush.msra.mxu0 0.0
  %685 = vmatpush.msra.mxu0 0.0
  %686 = vmatpush.msra.mxu0 0.0
  %687 = vmatpush.msra.mxu0 0.0
  %688 = vmatpush.msra.mxu0 %v570
  %689 = vmatmul.f32.gmra.mxu0 %v651
  %v690 = vpop.f32.mrf.mxu0
  %v691 = vadd.f32 0.0, %v690
  %692 = vdwg.mxu0
  %693 = vmatpush.msra.mxu0 0.0
  %694 = vmatpush.msra.mxu0 0.0
  %695 = vmatpush.msra.mxu0 0.0
  %696 = vmatpush.msra.mxu0 0.0
  %697 = vmatpush.msra.mxu0 0.0
  %698 = vmatpush.msra.mxu0 0.0
  %699 = vmatpush.msra.mxu0 0.0
  %700 = vmatpush.msra.mxu0 0.0
  %701 = vmatpush.msra.mxu0 0.0
  %702 = vmatpush.msra.mxu0 0.0
  %703 = vmatpush.msra.mxu0 0.0
  %704 = vmatpush.msra.mxu0 0.0
  %705 = vmatpush.msra.mxu0 0.0
  %706 = vmatpush.msra.mxu0 0.0
  %707 = vmatpush.msra.mxu0 0.0
  %708 = vmatpush.msra.mxu0 %v590
  %709 = vmatmul.f32.gmra.mxu0 %v651
  %v710 = vpop.f32.mrf.mxu0
  %v711 = vadd.f32 0.0, %v710
  %712 = vdwg.mxu0
  %v713 = vadd.f32 %v159, %v645
  %v714 = vadd.f32 %v160, %v648
  %v715 = vld [vmem:[%s16] sm:$0xff]
  %v716 = vld [vmem:[%s16 + $0x8] sm:$0xff]
  %v717 = vld [vmem:[%s17] sm:$0xff]
  %v718 = vld [vmem:[%s17 + $0x8] sm:$0xff]
  %v719 = vadd.f32 %v713, %v714
  %v720 = vrot.slane %v719, 4
  %v721 = vadd.f32 %v719, %v720
  %v722 = vrot.slane %v721, 2
  %v723 = vadd.f32 %v721, %v722
  %v724 = vrot.slane %v723, 1
  %v725 = vadd.f32 %v723, %v724
  %v726 = vmul.f32 %v725, %v110
  %v727 = vsub.f32 %v713, %v726
  %v728 = vsub.f32 %v714, %v726
  %v729 = vmul.f32 %v727, %v727
  %v730 = vmul.f32 %v728, %v728
  %v731 = vadd.f32 %v729, %v730
  %v732 = vrot.slane %v731, 4
  %v733 = vadd.f32 %v731, %v732
  %v734 = vrot.slane %v733, 2
  %v735 = vadd.f32 %v733, %v734
  %v736 = vrot.slane %v735, 1
  %v737 = vadd.f32 %v735, %v736
  %v738 = vmul.f32 %v737, %v110
  %v739 = vadd.f32 %v738, 1e-05
  %v740 = vrsqrt.pop %v739
  %v741 = vmul.f32 %v740, %v739
  %v742 = vmul.f32 %v741, %v740
  %v743 = vmul.f32 0.5, %v742
  %v744 = vsub.f32 1.5, %v743
  %v745 = vmul.f32 %v740, %v744
  %vm746 = vweird.f32 %v739
  %vm747 = vweird.f32 %v740
  %vm748 = vmor %vm746, %vm747
  %v749 = vsel %vm748, %v740, %v745
  %v750 = vmul.f32 %v727, %v749
  %v751 = vmul.f32 %v728, %v749
  %753 = vset.pattern.permute.xlu0 0
  %754 = vperm.xlu0 %753, %v715
  %v755 = vpop.permute.xlu0 %754
  %758 = vset.pattern.permute.xlu0 0
  %759 = vperm.xlu0 %758, %v716
  %v760 = vpop.permute.xlu0 %759
  %v762 = vmul.f32 %v750, %v755
  %v763 = vmul.f32 %v751, %v760
  %765 = vset.pattern.permute.xlu0 0
  %766 = vperm.xlu0 %765, %v717
  %v767 = vpop.permute.xlu0 %766
  %770 = vset.pattern.permute.xlu0 0
  %771 = vperm.xlu0 %770, %v718
  %v772 = vpop.permute.xlu0 %771
  %v774 = vadd.f32 %v762, %v767
  %v775 = vadd.f32 %v763, %v772
  %v776 = vadd.f32 %v193, %v671
  %v777 = vadd.f32 %v194, %v691
  %v778 = vadd.f32 %v195, %v711
  %v779 = vmul.f32 %v776, %v776
  %v780 = vmul.f32 %v777, %v777
  %v781 = vadd.f32 %v779, %v780
  %v782 = vmul.f32 %v778, %v778
  %v783 = vadd.f32 %v781, %v782
  %v784 = vmax.f32 %v783, 1e-08
  %v785 = vsel %vm167, %v784, 0.0
  %v786 = vrot.slane %v785, 4
  %v787 = vadd.f32 %v785, %v786
  %v788 = vrot.slane %v787, 2
  %v789 = vadd.f32 %v787, %v788
  %v790 = vrot.slane %v789, 1
  %v791 = vadd.f32 %v789, %v790
  %v792 = vmul.f32 %v791, %v181
  %v793 = vrsqrt.pop %v792
  %v794 = vmul.f32 %v793, %v792
  %v795 = vmul.f32 %v794, %v793
  %v796 = vmul.f32 0.5, %v795
  %v797 = vsub.f32 1.5, %v796
  %v798 = vmul.f32 %v793, %v797
  %vm799 = vweird.f32 %v792
  %vm800 = vweird.f32 %v793
  %vm801 = vmor %vm799, %vm800
  %v802 = vsel %vm801, %v793, %v798
  %v803 = vmul.f32 %v776, %v802
  %v804 = vmul.f32 %v777, %v802
  %v805 = vmul.f32 %v778, %v802
  %806 = vst [vmem:[%s18] sm:$0xff] %v774
  %807 = vst [vmem:[%s18 + $0x8] sm:$0xff] %v775
  %808 = vst [vmem:[%s19] sm:$0xf] %v803
  %s809 = scalar_lea.vmem %s19, 4
  %810 = vst [vmem:[%s809] sm:$0xf] %v804
  %s811 = scalar_lea.vmem %s19, 8
  %812 = vst [vmem:[%s811] sm:$0xf] %v805
  // Predicated region
  $region74: #{_lambda_.3} parent=0 // pred_check
    _
  $region75: #{_lambda_.3} parent=0 // pred_check_branch
    %814 = sbr.rel (0) target = $region77
  $region76: #{_lambda_.3} parent=0 // pred_region
    _
  $region77: #{_lambda_.3} parent=0 // pred_fallthru
    _
  // Predicated region
  $region78: #{_lambda_.3} parent=0 // pred_check
    _
  $region79: #{_lambda_.3} parent=0 // pred_check_branch
    %816 = sbr.rel (0) target = $region81
  $region80: #{_lambda_.3} parent=0 // pred_region
    _
  $region81: #{_lambda_.3} parent=0 // pred_fallthru
    _
  // Predicated region
  $region82: #{_lambda_.3} parent=0 // pred_check
    _
  $region83: #{_lambda_.3} parent=0 // pred_check_branch
    %818 = sbr.rel (0) target = $region85
  $region84: #{_lambda_.3} parent=0 // pred_region
    _
  $region85: #{_lambda_.3} parent=0 // pred_fallthru
    _
  // Predicated region
  $region86: #{_lambda_.3} parent=0 // pred_check
    _
  $region87: #{_lambda_.3} parent=0 // pred_check_branch
    %820 = sbr.rel (0) target = $region89
  $region88: #{_lambda_.3} parent=0 // pred_region
    _
  $region89: #{_lambda_.3} parent=0 // pred_fallthru
    _

// kernel: _lambda_.2
$region0: #{_lambda_.2}
  #allocation0 [shape = 'u32[]', space=smem, size = 0x4, offset = 0x4, fixed_abs, tag = 'smem constant byte address 0x4 - core index']
  #allocation1 [shape = 'u32[72,128]{1,0:T(1,128)}', space=vmem, size = 0x9000, scoped, tag = 'internal scratch']
  %s0 = inlined_call_operand.vmem [shape: f32[48,128], index: 0, kind: input, shape index: {}]
  %s1 = inlined_call_operand.vmem [shape: f32[3,12,128], index: 1, kind: input, shape index: {}]
  %s2 = inlined_call_operand.vmem [shape: f32[12,12], index: 2, kind: input, shape index: {}]
  %s3 = inlined_call_operand.vmem [shape: f32[16,60], index: 3, kind: input, shape index: {}]
  %s4 = inlined_call_operand.vmem [shape: f32[4,12], index: 4, kind: input, shape index: {}]
  %s5 = inlined_call_operand.vmem [shape: f32[16,1], index: 5, kind: input, shape index: {}]
  %s6 = inlined_call_operand.vmem [shape: f32[4,4], index: 6, kind: input, shape index: {}]
  %s7 = inlined_call_operand.vmem [shape: f32[16,20], index: 7, kind: input, shape index: {}]
  %s8 = inlined_call_operand.vmem [shape: f32[4,4], index: 8, kind: input, shape index: {}]
  %s9 = inlined_call_operand.vmem [shape: f32[16,1], index: 9, kind: input, shape index: {}]
  %s10 = inlined_call_operand.vmem [shape: f32[4,4], index: 10, kind: input, shape index: {}]
  %s11 = inlined_call_operand.vmem [shape: f32[16,20], index: 11, kind: input, shape index: {}]
  %s12 = inlined_call_operand.vmem [shape: f32[4,4], index: 12, kind: input, shape index: {}]
  %s13 = inlined_call_operand.vmem [shape: f32[16,1], index: 13, kind: input, shape index: {}]
  %s14 = inlined_call_operand.vmem [shape: f32[16,128], index: 14, kind: output, shape index: {0}]
  %s15 = inlined_call_operand.vmem [shape: f32[3,4,128], index: 15, kind: output, shape index: {1}]
  %16 = xla_tuple %s14, %s15
  %s17 = sld [smem:[#allocation0]]
  $region74: #{_lambda_.2} parent=0
    _
  %s19 = ssub.s32 1, %s17
  %s20 = scalar_select 0, %s19, %s17
  // Predicated region
  $region2: #{_lambda_.2} parent=0 // pred_check
    _
  $region3: #{_lambda_.2} parent=0 // pred_check_branch
    %22 = sbr.rel (0) target = $region5
  $region4: #{_lambda_.2} parent=0 // pred_region
    _
  $region5: #{_lambda_.2} parent=0 // pred_fallthru
    _
  // Predicated region
  $region6: #{_lambda_.2} parent=0 // pred_check
    _
  $region7: #{_lambda_.2} parent=0 // pred_check_branch
    %24 = sbr.rel (0) target = $region9
  $region8: #{_lambda_.2} parent=0 // pred_region
    _
  $region9: #{_lambda_.2} parent=0 // pred_fallthru
    _
  // Predicated region
  $region10: #{_lambda_.2} parent=0 // pred_check
    _
  $region11: #{_lambda_.2} parent=0 // pred_check_branch
    %26 = sbr.rel (0) target = $region13
  $region12: #{_lambda_.2} parent=0 // pred_region
    _
  $region13: #{_lambda_.2} parent=0 // pred_fallthru
    _
  // Predicated region
  $region14: #{_lambda_.2} parent=0 // pred_check
    _
  $region15: #{_lambda_.2} parent=0 // pred_check_branch
    %28 = sbr.rel (0) target = $region17
  $region16: #{_lambda_.2} parent=0 // pred_region
    _
  $region17: #{_lambda_.2} parent=0 // pred_fallthru
    _
  // Predicated region
  $region18: #{_lambda_.2} parent=0 // pred_check
    _
  $region19: #{_lambda_.2} parent=0 // pred_check_branch
    %30 = sbr.rel (0) target = $region21
  $region20: #{_lambda_.2} parent=0 // pred_region
    _
  $region21: #{_lambda_.2} parent=0 // pred_fallthru
    _
  // Predicated region
  $region22: #{_lambda_.2} parent=0 // pred_check
    _
  $region23: #{_lambda_.2} parent=0 // pred_check_branch
    %32 = sbr.rel (0) target = $region25
  $region24: #{_lambda_.2} parent=0 // pred_region
    _
  $region25: #{_lambda_.2} parent=0 // pred_fallthru
    _
  // Predicated region
  $region26: #{_lambda_.2} parent=0 // pred_check
    _
  $region27: #{_lambda_.2} parent=0 // pred_check_branch
    %34 = sbr.rel (0) target = $region29
  $region28: #{_lambda_.2} parent=0 // pred_region
    _
  $region29: #{_lambda_.2} parent=0 // pred_fallthru
    _
  // Predicated region
  $region30: #{_lambda_.2} parent=0 // pred_check
    _
  $region31: #{_lambda_.2} parent=0 // pred_check_branch
    %36 = sbr.rel (0) target = $region33
  $region32: #{_lambda_.2} parent=0 // pred_region
    _
  $region33: #{_lambda_.2} parent=0 // pred_fallthru
    _
  // Predicated region
  $region34: #{_lambda_.2} parent=0 // pred_check
    _
  $region35: #{_lambda_.2} parent=0 // pred_check_branch
    %38 = sbr.rel (0) target = $region37
  $region36: #{_lambda_.2} parent=0 // pred_region
    _
  $region37: #{_lambda_.2} parent=0 // pred_fallthru
    _
  // Predicated region
  $region38: #{_lambda_.2} parent=0 // pred_check
    _
  $region39: #{_lambda_.2} parent=0 // pred_check_branch
    %40 = sbr.rel (0) target = $region41
  $region40: #{_lambda_.2} parent=0 // pred_region
    _
  $region41: #{_lambda_.2} parent=0 // pred_fallthru
    _
  // Predicated region
  $region42: #{_lambda_.2} parent=0 // pred_check
    _
  $region43: #{_lambda_.2} parent=0 // pred_check_branch
    %42 = sbr.rel (0) target = $region45
  $region44: #{_lambda_.2} parent=0 // pred_region
    _
  $region45: #{_lambda_.2} parent=0 // pred_fallthru
    _
  // Predicated region
  $region46: #{_lambda_.2} parent=0 // pred_check
    _
  $region47: #{_lambda_.2} parent=0 // pred_check_branch
    %44 = sbr.rel (0) target = $region49
  $region48: #{_lambda_.2} parent=0 // pred_region
    _
  $region49: #{_lambda_.2} parent=0 // pred_fallthru
    _
  // Predicated region
  $region50: #{_lambda_.2} parent=0 // pred_check
    _
  $region51: #{_lambda_.2} parent=0 // pred_check_branch
    %46 = sbr.rel (0) target = $region53
  $region52: #{_lambda_.2} parent=0 // pred_region
    _
  $region53: #{_lambda_.2} parent=0 // pred_fallthru
    _
  // Predicated region
  $region54: #{_lambda_.2} parent=0 // pred_check
    _
  $region55: #{_lambda_.2} parent=0 // pred_check_branch
    %48 = sbr.rel (0) target = $region57
  $region56: #{_lambda_.2} parent=0 // pred_region
    _
  $region57: #{_lambda_.2} parent=0 // pred_fallthru
    _
  %v49 = vld [vmem:[%s0] sm:$0xff]
  %v50 = vld [vmem:[%s0 + $0x8] sm:$0xff]
  %v51 = vld [vmem:[%s0 + $0x10] sm:$0xff]
  %v52 = vld [vmem:[%s0 + $0x18] sm:$0xff]
  %v53 = vld [vmem:[%s0 + $0x20] sm:$0xff]
  %v54 = vld [vmem:[%s0 + $0x28] sm:$0xff]
  %v55 = vld [vmem:[%s1] sm:$0xff]
  %v56 = vld [vmem:[%s1 + $0x8] sm:$0xf]
  %s57 = scalar_lea.vmem %s1, 16
  %v58 = vld [vmem:[%s57] sm:$0xff]
  %v59 = vld [vmem:[%s57 + $0x8] sm:$0xf]
  %s60 = scalar_lea.vmem %s1, 32
  %v61 = vld [vmem:[%s60] sm:$0xff]
  %v62 = vld [vmem:[%s60 + $0x8] sm:$0xf]
  %v63 = vld [vmem:[%s2] sm:$0xff]
  %v64 = vld [vmem:[%s2 + $0x8] sm:$0xf]
  %v65 = vld [vmem:[%s3] sm:$0xff]
  %v66 = vld [vmem:[%s3 + $0x8] sm:$0xff]
  %v67 = vld [vmem:[%s4] sm:$0xf]
  %v68 = vld [vmem:[%s5] sm:$0xff]
  %v69 = vld [vmem:[%s5 + $0x8] sm:$0xff]
  %vm70 = vcmask 97280
  %v72 = vsel %vm70, %v63, 0
  %v75 = vsel %vm70, %v64, 0
  %vm77 = vcmask 1043456
  %v79 = vsel %vm77, %v56, 0
  %v82 = vsel %vm77, %v59, 0
  %v85 = vsel %vm77, %v62, 0
  %87 = vmatpush.msra.mxu0 0.0
  %88 = vmatpush.msra.mxu0 0.0
  %89 = vmatpush.msra.mxu0 0.0
  %90 = vmatpush.msra.mxu0 0.0
  %91 = vmatpush.msra.mxu0 0.0
  %92 = vmatpush.msra.mxu0 0.0
  %93 = vmatpush.msra.mxu0 0.0
  %94 = vmatpush.msra.mxu0 0.0
  %95 = vmatpush.msra.mxu0 0.0
  %96 = vmatpush.msra.mxu0 0.0
  %97 = vmatpush.msra.mxu0 0.0
  %98 = vmatpush.msra.mxu0 0.0
  %99 = vmatpush.msra.mxu0 0.0
  %100 = vmatpush.msra.mxu0 0.0
  %101 = vmatpush.msra.mxu0 %v79
  %102 = vmatpush.msra.mxu0 %v55
  %103 = vmatmul.f32.gmra.mxu0 %v72
  %v104 = vpop.f32.mrf.mxu0
  %v105 = vadd.f32 0.0, %v104
  %106 = vmatmul.f32.gmra.mxu0 %v75
  %v107 = vpop.f32.mrf.mxu0
  %v108 = vadd.f32 0.0, %v107
  %109 = vdwg.mxu0
  %110 = vmatpush.msra.mxu0 0.0
  %111 = vmatpush.msra.mxu0 0.0
  %112 = vmatpush.msra.mxu0 0.0
  %113 = vmatpush.msra.mxu0 0.0
  %114 = vmatpush.msra.mxu0 0.0
  %115 = vmatpush.msra.mxu0 0.0
  %116 = vmatpush.msra.mxu0 0.0
  %117 = vmatpush.msra.mxu0 0.0
  %118 = vmatpush.msra.mxu0 0.0
  %119 = vmatpush.msra.mxu0 0.0
  %120 = vmatpush.msra.mxu0 0.0
  %121 = vmatpush.msra.mxu0 0.0
  %122 = vmatpush.msra.mxu0 0.0
  %123 = vmatpush.msra.mxu0 0.0
  %124 = vmatpush.msra.mxu0 %v82
  %125 = vmatpush.msra.mxu0 %v58
  %126 = vmatmul.f32.gmra.mxu0 %v72
  %v127 = vpop.f32.mrf.mxu0
  %v128 = vadd.f32 0.0, %v127
  %129 = vmatmul.f32.gmra.mxu0 %v75
  %v130 = vpop.f32.mrf.mxu0
  %v131 = vadd.f32 0.0, %v130
  %132 = vdwg.mxu0
  %133 = vmatpush.msra.mxu0 0.0
  %134 = vmatpush.msra.mxu0 0.0
  %135 = vmatpush.msra.mxu0 0.0
  %136 = vmatpush.msra.mxu0 0.0
  %137 = vmatpush.msra.mxu0 0.0
  %138 = vmatpush.msra.mxu0 0.0
  %139 = vmatpush.msra.mxu0 0.0
  %140 = vmatpush.msra.mxu0 0.0
  %141 = vmatpush.msra.mxu0 0.0
  %142 = vmatpush.msra.mxu0 0.0
  %143 = vmatpush.msra.mxu0 0.0
  %144 = vmatpush.msra.mxu0 0.0
  %145 = vmatpush.msra.mxu0 0.0
  %146 = vmatpush.msra.mxu0 0.0
  %147 = vmatpush.msra.mxu0 %v85
  %148 = vmatpush.msra.mxu0 %v61
  %149 = vmatmul.f32.gmra.mxu0 %v72
  %v150 = vpop.f32.mrf.mxu0
  %v151 = vadd.f32 0.0, %v150
  %152 = vmatmul.f32.gmra.mxu0 %v75
  %v153 = vpop.f32.mrf.mxu0
  %v154 = vadd.f32 0.0, %v153
  %155 = vdwg.mxu0
  %v156 = vmul.f32 %v105, %v105
  %v157 = vmul.f32 %v108, %v108
  %v158 = vmul.f32 %v128, %v128
  %v159 = vmul.f32 %v131, %v131
  %v160 = vadd.f32 %v156, %v158
  %v161 = vadd.f32 %v157, %v159
  %v162 = vmul.f32 %v151, %v151
  %v163 = vmul.f32 %v154, %v154
  %v164 = vadd.f32 %v160, %v162
  %v165 = vadd.f32 %v161, %v163
  %v166 = vmax.f32 %v164, 1e-08
  %v167 = vmax.f32 %v165, 1e-08
  %v168 = vrsqrt.pop %v166
  %v169 = vmul.f32 %v168, %v166
  %v170 = vmul.f32 %v169, %v168
  %v171 = vmul.f32 0.5, %v170
  %v172 = vsub.f32 1.5, %v171
  %v173 = vmul.f32 %v168, %v172
  %v174 = vmul.f32 %v166, %v173
  %vm175 = vcmp.eq.f32.partialorder %v166, inf
  %v176 = vsel %vm175, %v166, %v174
  %vm177 = vcmp.eq.f32.partialorder %v166, 0.0
  %v178 = vand.u32 %v166, 2147483648
  %v179 = vsel %vm177, %v178, %v176
  %v180 = vrsqrt.pop %v167
  %v181 = vmul.f32 %v180, %v167
  %v182 = vmul.f32 %v181, %v180
  %v183 = vmul.f32 0.5, %v182
  %v184 = vsub.f32 1.5, %v183
  %v185 = vmul.f32 %v180, %v184
  %v186 = vmul.f32 %v167, %v185
  %vm187 = vcmp.eq.f32.partialorder %v167, inf
  %v188 = vsel %vm187, %v167, %v186
  %vm189 = vcmp.eq.f32.partialorder %v167, 0.0
  %v190 = vand.u32 %v167, 2147483648
  %v191 = vsel %vm189, %v190, %v188
  %193 = vset.pattern.permute.xlu0 0
  %194 = vperm.xlu0 %193, %v68
  %v195 = vpop.permute.xlu0 %194
  %198 = vset.pattern.permute.xlu0 0
  %199 = vperm.xlu0 %198, %v69
  %v200 = vpop.permute.xlu0 %199
  %vm202 = vcmask 490496
  %v204 = vsel %vm202, %v65, 0
  %v207 = vsel %vm202, %v66, 0
  %v210 = vsel %vm77, %v191, 0
  %212 = vmatpush.msra.mxu0 0.0
  %213 = vmatpush.msra.mxu0 0.0
  %214 = vmatpush.msra.mxu0 0.0
  %215 = vmatpush.msra.mxu0 0.0
  %216 = vmatpush.msra.mxu0 0.0
  %217 = vmatpush.msra.mxu0 0.0
  %218 = vmatpush.msra.mxu0 0.0
  %219 = vmatpush.msra.mxu0 0.0
  %220 = vmatpush.msra.mxu0 %v210
  %221 = vmatpush.msra.mxu0 %v179
  %222 = vmatpush.msra.mxu0 %v54
  %223 = vmatpush.msra.mxu0 %v53
  %224 = vmatpush.msra.mxu0 %v52
  %225 = vmatpush.msra.mxu0 %v51
  %226 = vmatpush.msra.mxu0 %v50
  %227 = vmatpush.msra.mxu0 %v49
  %228 = vmatmul.f32.gmra.mxu0 %v204
  %v229 = vpop.f32.mrf.mxu0
  %v230 = vadd.f32 %v195, %v229
  %231 = vmatmul.f32.gmra.mxu0 %v207
  %v232 = vpop.f32.mrf.mxu0
  %v233 = vadd.f32 %v200, %v232
  %234 = vdwg.mxu0
  %v236 = vsel %vm70, %v67, 0
  %v239 = vsel %vm77, %v108, 0
  %v242 = vsel %vm77, %v131, 0
  %v245 = vsel %vm77, %v154, 0
  %247 = vmatpush.msra.mxu0 0.0
  %248 = vmatpush.msra.mxu0 0.0
  %249 = vmatpush.msra.mxu0 0.0
  %250 = vmatpush.msra.mxu0 0.0
  %251 = vmatpush.msra.mxu0 0.0
  %252 = vmatpush.msra.mxu0 0.0
  %253 = vmatpush.msra.mxu0 0.0
  %254 = vmatpush.msra.mxu0 0.0
  %255 = vmatpush.msra.mxu0 0.0
  %256 = vmatpush.msra.mxu0 0.0
  %257 = vmatpush.msra.mxu0 0.0
  %258 = vmatpush.msra.mxu0 0.0
  %259 = vmatpush.msra.mxu0 0.0
  %260 = vmatpush.msra.mxu0 0.0
  %261 = vmatpush.msra.mxu0 %v239
  %262 = vmatpush.msra.mxu0 %v105
  %263 = vmatmul.f32.gmra.mxu0 %v236
  %v264 = vpop.f32.mrf.mxu0
  %v265 = vadd.f32 0.0, %v264
  %266 = vdwg.mxu0
  %267 = vmatpush.msra.mxu0 0.0
  %268 = vmatpush.msra.mxu0 0.0
  %269 = vmatpush.msra.mxu0 0.0
  %270 = vmatpush.msra.mxu0 0.0
  %271 = vmatpush.msra.mxu0 0.0
  %272 = vmatpush.msra.mxu0 0.0
  %273 = vmatpush.msra.mxu0 0.0
  %274 = vmatpush.msra.mxu0 0.0
  %275 = vmatpush.msra.mxu0 0.0
  %276 = vmatpush.msra.mxu0 0.0
  %277 = vmatpush.msra.mxu0 0.0
  %278 = vmatpush.msra.mxu0 0.0
  %279 = vmatpush.msra.mxu0 0.0
  %280 = vmatpush.msra.mxu0 0.0
  %281 = vmatpush.msra.mxu0 %v242
  %282 = vmatpush.msra.mxu0 %v128
  %283 = vmatmul.f32.gmra.mxu0 %v236
  %v284 = vpop.f32.mrf.mxu0
  %v285 = vadd.f32 0.0, %v284
  %286 = vdwg.mxu0
  %287 = vmatpush.msra.mxu0 0.0
  %288 = vmatpush.msra.mxu0 0.0
  %289 = vmatpush.msra.mxu0 0.0
  %290 = vmatpush.msra.mxu0 0.0
  %291 = vmatpush.msra.mxu0 0.0
  %292 = vmatpush.msra.mxu0 0.0
  %293 = vmatpush.msra.mxu0 0.0
  %294 = vmatpush.msra.mxu0 0.0
  %295 = vmatpush.msra.mxu0 0.0
  %296 = vmatpush.msra.mxu0 0.0
  %297 = vmatpush.msra.mxu0 0.0
  %298 = vmatpush.msra.mxu0 0.0
  %299 = vmatpush.msra.mxu0 0.0
  %300 = vmatpush.msra.mxu0 0.0
  %301 = vmatpush.msra.mxu0 %v245
  %302 = vmatpush.msra.mxu0 %v151
  %303 = vmatmul.f32.gmra.mxu0 %v236
  %v304 = vpop.f32.mrf.mxu0
  %v305 = vadd.f32 0.0, %v304
  %306 = vdwg.mxu0
  %v307 = vmul.f32 %v265, %v265
  %v308 = vmul.f32 %v285, %v285
  %v309 = vadd.f32 %v307, %v308
  %v310 = vmul.f32 %v305, %v305
  %v311 = vadd.f32 %v309, %v310
  %v312 = vmax.f32 %v311, 1e-08
  %v313 = vrsqrt.pop %v312
  %v314 = vmul.f32 %v313, %v312
  %v315 = vmul.f32 %v314, %v313
  %v316 = vmul.f32 0.5, %v315
  %v317 = vsub.f32 1.5, %v316
  %v318 = vmul.f32 %v313, %v317
  %v319 = vmul.f32 %v312, %v318
  %vm320 = vcmp.eq.f32.partialorder %v312, inf
  %v321 = vsel %vm320, %v312, %v319
  %vm322 = vcmp.eq.f32.partialorder %v312, 0.0
  %v323 = vand.u32 %v312, 2147483648
  %v324 = vsel %vm322, %v323, %v321
  %v325 = vxor.u32 %v324, 2147483648
  %v326 = vmul.f32 %v325, 1.442695
  %v327 = vpow.pop %v326
  %v328 = vadd.f32 %v327, 1.0
  %v329 = vrcp.pop %v328
  %v330 = vmul.f32 %v328, %v329
  %v331 = vsub.f32 1.0, %v330
  %v332 = vmul.f32 %v329, %v331
  %v333 = vadd.f32 %v329, %v332
  %vm334 = vweird.f32 %v328
  %vm335 = vweird.f32 %v329
  %vm336 = vmor %vm334, %vm335
  %v337 = vsel %vm336, %v329, %v333
  %v338 = vand.u32 2147483647, %v328
  %vm339 = vcmp.eq.f32.partialorder %v338, 8.507059e+37
  %v340 = vand.u32 %v328, 2147483648
  %v341 = vor.u32 1.1754944e-38, %v340
  %v342 = vsel %vm339, %v341, %v337
  %v343 = vmul.f32 1.0, %v342
  %v344 = vmul.f32 %v265, %v343
  %v345 = vmul.f32 %v285, %v343
  %v346 = vmul.f32 %v305, %v343
  %v347 = vmax.f32 %v230, 0.0
  %v348 = vmax.f32 %v233, 0.0
  %v349 = vld [vmem:[%s6] sm:$0xf]
  %v350 = vld [vmem:[%s7] sm:$0xff]
  %v351 = vld [vmem:[%s7 + $0x8] sm:$0xff]
  %v352 = vld [vmem:[%s8] sm:$0xf]
  %v353 = vld [vmem:[%s9] sm:$0xff]
  %v354 = vld [vmem:[%s9 + $0x8] sm:$0xff]
  %vm355 = vcmask 31744
  %v357 = vsel %vm355, %v349, 0
  %v360 = vsel %vm77, %v344, 0
  %v363 = vsel %vm77, %v345, 0
  %v366 = vsel %vm77, %v346, 0
  %368 = vmatpush.msra.mxu0 0.0
  %369 = vmatpush.msra.mxu0 0.0
  %370 = vmatpush.msra.mxu0 0.0
  %371 = vmatpush.msra.mxu0 0.0
  %372 = vmatpush.msra.mxu0 0.0
  %373 = vmatpush.msra.mxu0 0.0
  %374 = vmatpush.msra.mxu0 0.0
  %375 = vmatpush.msra.mxu0 0.0
  %376 = vmatpush.msra.mxu0 0.0
  %377 = vmatpush.msra.mxu0 0.0
  %378 = vmatpush.msra.mxu0 0.0
  %379 = vmatpush.msra.mxu0 0.0
  %380 = vmatpush.msra.mxu0 0.0
  %381 = vmatpush.msra.mxu0 0.0
  %382 = vmatpush.msra.mxu0 0.0
  %383 = vmatpush.msra.mxu0 %v360
  %384 = vmatmul.f32.gmra.mxu0 %v357
  %v385 = vpop.f32.mrf.mxu0
  %v386 = vadd.f32 0.0, %v385
  %387 = vdwg.mxu0
  %388 = vmatpush.msra.mxu0 0.0
  %389 = vmatpush.msra.mxu0 0.0
  %390 = vmatpush.msra.mxu0 0.0
  %391 = vmatpush.msra.mxu0 0.0
  %392 = vmatpush.msra.mxu0 0.0
  %393 = vmatpush.msra.mxu0 0.0
  %394 = vmatpush.msra.mxu0 0.0
  %395 = vmatpush.msra.mxu0 0.0
  %396 = vmatpush.msra.mxu0 0.0
  %397 = vmatpush.msra.mxu0 0.0
  %398 = vmatpush.msra.mxu0 0.0
  %399 = vmatpush.msra.mxu0 0.0
  %400 = vmatpush.msra.mxu0 0.0
  %401 = vmatpush.msra.mxu0 0.0
  %402 = vmatpush.msra.mxu0 0.0
  %403 = vmatpush.msra.mxu0 %v363
  %404 = vmatmul.f32.gmra.mxu0 %v357
  %v405 = vpop.f32.mrf.mxu0
  %v406 = vadd.f32 0.0, %v405
  %407 = vdwg.mxu0
  %408 = vmatpush.msra.mxu0 0.0
  %409 = vmatpush.msra.mxu0 0.0
  %410 = vmatpush.msra.mxu0 0.0
  %411 = vmatpush.msra.mxu0 0.0
  %412 = vmatpush.msra.mxu0 0.0
  %413 = vmatpush.msra.mxu0 0.0
  %414 = vmatpush.msra.mxu0 0.0
  %415 = vmatpush.msra.mxu0 0.0
  %416 = vmatpush.msra.mxu0 0.0
  %417 = vmatpush.msra.mxu0 0.0
  %418 = vmatpush.msra.mxu0 0.0
  %419 = vmatpush.msra.mxu0 0.0
  %420 = vmatpush.msra.mxu0 0.0
  %421 = vmatpush.msra.mxu0 0.0
  %422 = vmatpush.msra.mxu0 0.0
  %423 = vmatpush.msra.mxu0 %v366
  %424 = vmatmul.f32.gmra.mxu0 %v357
  %v425 = vpop.f32.mrf.mxu0
  %v426 = vadd.f32 0.0, %v425
  %427 = vdwg.mxu0
  %v428 = vmul.f32 %v386, %v386
  %v429 = vmul.f32 %v406, %v406
  %v430 = vadd.f32 %v428, %v429
  %v431 = vmul.f32 %v426, %v426
  %v432 = vadd.f32 %v430, %v431
  %v433 = vmax.f32 %v432, 1e-08
  %v434 = vrsqrt.pop %v433
  %v435 = vmul.f32 %v434, %v433
  %v436 = vmul.f32 %v435, %v434
  %v437 = vmul.f32 0.5, %v436
  %v438 = vsub.f32 1.5, %v437
  %v439 = vmul.f32 %v434, %v438
  %v440 = vmul.f32 %v433, %v439
  %vm441 = vcmp.eq.f32.partialorder %v433, inf
  %v442 = vsel %vm441, %v433, %v440
  %vm443 = vcmp.eq.f32.partialorder %v433, 0.0
  %v444 = vand.u32 %v433, 2147483648
  %v445 = vsel %vm443, %v444, %v442
  %447 = vset.pattern.permute.xlu0 0
  %448 = vperm.xlu0 %447, %v353
  %v449 = vpop.permute.xlu0 %448
  %452 = vset.pattern.permute.xlu0 0
  %453 = vperm.xlu0 %452, %v354
  %v454 = vpop.permute.xlu0 %453
  %vm456 = vcmask 162816
  %v458 = vsel %vm456, %v350, 0
  %v461 = vsel %vm456, %v351, 0
  %v464 = vsel %vm77, %v445, 0
  %466 = vmatpush.msra.mxu0 0.0
  %467 = vmatpush.msra.mxu0 0.0
  %468 = vmatpush.msra.mxu0 0.0
  %469 = vmatpush.msra.mxu0 0.0
  %470 = vmatpush.msra.mxu0 0.0
  %471 = vmatpush.msra.mxu0 0.0
  %472 = vmatpush.msra.mxu0 0.0
  %473 = vmatpush.msra.mxu0 0.0
  %474 = vmatpush.msra.mxu0 0.0
  %475 = vmatpush.msra.mxu0 0.0
  %476 = vmatpush.msra.mxu0 0.0
  %477 = vmatpush.msra.mxu0 0.0
  %478 = vmatpush.msra.mxu0 0.0
  %479 = vmatpush.msra.mxu0 %v464
  %480 = vmatpush.msra.mxu0 %v348
  %481 = vmatpush.msra.mxu0 %v347
  %482 = vmatmul.f32.gmra.mxu0 %v458
  %v483 = vpop.f32.mrf.mxu0
  %v484 = vadd.f32 %v449, %v483
  %485 = vmatmul.f32.gmra.mxu0 %v461
  %v486 = vpop.f32.mrf.mxu0
  %v487 = vadd.f32 %v454, %v486
  %488 = vdwg.mxu0
  %v490 = vsel %vm355, %v352, 0
  %v493 = vsel %vm77, %v386, 0
  %v496 = vsel %vm77, %v406, 0
  %v499 = vsel %vm77, %v426, 0
  %501 = vmatpush.msra.mxu0 0.0
  %502 = vmatpush.msra.mxu0 0.0
  %503 = vmatpush.msra.mxu0 0.0
  %504 = vmatpush.msra.mxu0 0.0
  %505 = vmatpush.msra.mxu0 0.0
  %506 = vmatpush.msra.mxu0 0.0
  %507 = vmatpush.msra.mxu0 0.0
  %508 = vmatpush.msra.mxu0 0.0
  %509 = vmatpush.msra.mxu0 0.0
  %510 = vmatpush.msra.mxu0 0.0
  %511 = vmatpush.msra.mxu0 0.0
  %512 = vmatpush.msra.mxu0 0.0
  %513 = vmatpush.msra.mxu0 0.0
  %514 = vmatpush.msra.mxu0 0.0
  %515 = vmatpush.msra.mxu0 0.0
  %516 = vmatpush.msra.mxu0 %v493
  %517 = vmatmul.f32.gmra.mxu0 %v490
  %v518 = vpop.f32.mrf.mxu0
  %v519 = vadd.f32 0.0, %v518
  %520 = vdwg.mxu0
  %521 = vmatpush.msra.mxu0 0.0
  %522 = vmatpush.msra.mxu0 0.0
  %523 = vmatpush.msra.mxu0 0.0
  %524 = vmatpush.msra.mxu0 0.0
  %525 = vmatpush.msra.mxu0 0.0
  %526 = vmatpush.msra.mxu0 0.0
  %527 = vmatpush.msra.mxu0 0.0
  %528 = vmatpush.msra.mxu0 0.0
  %529 = vmatpush.msra.mxu0 0.0
  %530 = vmatpush.msra.mxu0 0.0
  %531 = vmatpush.msra.mxu0 0.0
  %532 = vmatpush.msra.mxu0 0.0
  %533 = vmatpush.msra.mxu0 0.0
  %534 = vmatpush.msra.mxu0 0.0
  %535 = vmatpush.msra.mxu0 0.0
  %536 = vmatpush.msra.mxu0 %v496
  %537 = vmatmul.f32.gmra.mxu0 %v490
  %v538 = vpop.f32.mrf.mxu0
  %v539 = vadd.f32 0.0, %v538
  %540 = vdwg.mxu0
  %541 = vmatpush.msra.mxu0 0.0
  %542 = vmatpush.msra.mxu0 0.0
  %543 = vmatpush.msra.mxu0 0.0
  %544 = vmatpush.msra.mxu0 0.0
  %545 = vmatpush.msra.mxu0 0.0
  %546 = vmatpush.msra.mxu0 0.0
  %547 = vmatpush.msra.mxu0 0.0
  %548 = vmatpush.msra.mxu0 0.0
  %549 = vmatpush.msra.mxu0 0.0
  %550 = vmatpush.msra.mxu0 0.0
  %551 = vmatpush.msra.mxu0 0.0
  %552 = vmatpush.msra.mxu0 0.0
  %553 = vmatpush.msra.mxu0 0.0
  %554 = vmatpush.msra.mxu0 0.0
  %555 = vmatpush.msra.mxu0 0.0
  %556 = vmatpush.msra.mxu0 %v499
  %557 = vmatmul.f32.gmra.mxu0 %v490
  %v558 = vpop.f32.mrf.mxu0
  %v559 = vadd.f32 0.0, %v558
  %560 = vdwg.mxu0
  %v561 = vmul.f32 %v519, %v519
  %v562 = vmul.f32 %v539, %v539
  %v563 = vadd.f32 %v561, %v562
  %v564 = vmul.f32 %v559, %v559
  %v565 = vadd.f32 %v563, %v564
  %v566 = vmax.f32 %v565, 1e-08
  %v567 = vrsqrt.pop %v566
  %v568 = vmul.f32 %v567, %v566
  %v569 = vmul.f32 %v568, %v567
  %v570 = vmul.f32 0.5, %v569
  %v571 = vsub.f32 1.5, %v570
  %v572 = vmul.f32 %v567, %v571
  %v573 = vmul.f32 %v566, %v572
  %vm574 = vcmp.eq.f32.partialorder %v566, inf
  %v575 = vsel %vm574, %v566, %v573
  %vm576 = vcmp.eq.f32.partialorder %v566, 0.0
  %v577 = vand.u32 %v566, 2147483648
  %v578 = vsel %vm576, %v577, %v575
  %v579 = vxor.u32 %v578, 2147483648
  %v580 = vmul.f32 %v579, 1.442695
  %v581 = vpow.pop %v580
  %v582 = vadd.f32 %v581, 1.0
  %v583 = vrcp.pop %v582
  %v584 = vmul.f32 %v582, %v583
  %v585 = vsub.f32 1.0, %v584
  %v586 = vmul.f32 %v583, %v585
  %v587 = vadd.f32 %v583, %v586
  %vm588 = vweird.f32 %v582
  %vm589 = vweird.f32 %v583
  %vm590 = vmor %vm588, %vm589
  %v591 = vsel %vm590, %v583, %v587
  %v592 = vand.u32 2147483647, %v582
  %vm593 = vcmp.eq.f32.partialorder %v592, 8.507059e+37
  %v594 = vand.u32 %v582, 2147483648
  %v595 = vor.u32 1.1754944e-38, %v594
  %v596 = vsel %vm593, %v595, %v591
  %v597 = vmul.f32 1.0, %v596
  %v598 = vmul.f32 %v519, %v597
  %v599 = vmul.f32 %v539, %v597
  %v600 = vmul.f32 %v559, %v597
  %v601 = vmax.f32 %v484, 0.0
  %v602 = vmax.f32 %v487, 0.0
  %v603 = vld [vmem:[%s10] sm:$0xf]
  %v604 = vld [vmem:[%s11] sm:$0xff]
  %v605 = vld [vmem:[%s11 + $0x8] sm:$0xff]
  %v606 = vld [vmem:[%s12] sm:$0xf]
  %v607 = vld [vmem:[%s13] sm:$0xff]
  %v608 = vld [vmem:[%s13 + $0x8] sm:$0xff]
  %v610 = vsel %vm355, %v603, 0
  %v613 = vsel %vm77, %v598, 0
  %v616 = vsel %vm77, %v599, 0
  %v619 = vsel %vm77, %v600, 0
  %621 = vmatpush.msra.mxu0 0.0
  %622 = vmatpush.msra.mxu0 0.0
  %623 = vmatpush.msra.mxu0 0.0
  %624 = vmatpush.msra.mxu0 0.0
  %625 = vmatpush.msra.mxu0 0.0
  %626 = vmatpush.msra.mxu0 0.0
  %627 = vmatpush.msra.mxu0 0.0
  %628 = vmatpush.msra.mxu0 0.0
  %629 = vmatpush.msra.mxu0 0.0
  %630 = vmatpush.msra.mxu0 0.0
  %631 = vmatpush.msra.mxu0 0.0
  %632 = vmatpush.msra.mxu0 0.0
  %633 = vmatpush.msra.mxu0 0.0
  %634 = vmatpush.msra.mxu0 0.0
  %635 = vmatpush.msra.mxu0 0.0
  %636 = vmatpush.msra.mxu0 %v613
  %637 = vmatmul.f32.gmra.mxu0 %v610
  %v638 = vpop.f32.mrf.mxu0
  %v639 = vadd.f32 0.0, %v638
  %640 = vdwg.mxu0
  %641 = vmatpush.msra.mxu0 0.0
  %642 = vmatpush.msra.mxu0 0.0
  %643 = vmatpush.msra.mxu0 0.0
  %644 = vmatpush.msra.mxu0 0.0
  %645 = vmatpush.msra.mxu0 0.0
  %646 = vmatpush.msra.mxu0 0.0
  %647 = vmatpush.msra.mxu0 0.0
  %648 = vmatpush.msra.mxu0 0.0
  %649 = vmatpush.msra.mxu0 0.0
  %650 = vmatpush.msra.mxu0 0.0
  %651 = vmatpush.msra.mxu0 0.0
  %652 = vmatpush.msra.mxu0 0.0
  %653 = vmatpush.msra.mxu0 0.0
  %654 = vmatpush.msra.mxu0 0.0
  %655 = vmatpush.msra.mxu0 0.0
  %656 = vmatpush.msra.mxu0 %v616
  %657 = vmatmul.f32.gmra.mxu0 %v610
  %v658 = vpop.f32.mrf.mxu0
  %v659 = vadd.f32 0.0, %v658
  %660 = vdwg.mxu0
  %661 = vmatpush.msra.mxu0 0.0
  %662 = vmatpush.msra.mxu0 0.0
  %663 = vmatpush.msra.mxu0 0.0
  %664 = vmatpush.msra.mxu0 0.0
  %665 = vmatpush.msra.mxu0 0.0
  %666 = vmatpush.msra.mxu0 0.0
  %667 = vmatpush.msra.mxu0 0.0
  %668 = vmatpush.msra.mxu0 0.0
  %669 = vmatpush.msra.mxu0 0.0
  %670 = vmatpush.msra.mxu0 0.0
  %671 = vmatpush.msra.mxu0 0.0
  %672 = vmatpush.msra.mxu0 0.0
  %673 = vmatpush.msra.mxu0 0.0
  %674 = vmatpush.msra.mxu0 0.0
  %675 = vmatpush.msra.mxu0 0.0
  %676 = vmatpush.msra.mxu0 %v619
  %677 = vmatmul.f32.gmra.mxu0 %v610
  %v678 = vpop.f32.mrf.mxu0
  %v679 = vadd.f32 0.0, %v678
  %680 = vdwg.mxu0
  %v681 = vmul.f32 %v639, %v639
  %v682 = vmul.f32 %v659, %v659
  %v683 = vadd.f32 %v681, %v682
  %v684 = vmul.f32 %v679, %v679
  %v685 = vadd.f32 %v683, %v684
  %v686 = vmax.f32 %v685, 1e-08
  %v687 = vrsqrt.pop %v686
  %v688 = vmul.f32 %v687, %v686
  %v689 = vmul.f32 %v688, %v687
  %v690 = vmul.f32 0.5, %v689
  %v691 = vsub.f32 1.5, %v690
  %v692 = vmul.f32 %v687, %v691
  %v693 = vmul.f32 %v686, %v692
  %vm694 = vcmp.eq.f32.partialorder %v686, inf
  %v695 = vsel %vm694, %v686, %v693
  %vm696 = vcmp.eq.f32.partialorder %v686, 0.0
  %v697 = vand.u32 %v686, 2147483648
  %v698 = vsel %vm696, %v697, %v695
  %700 = vset.pattern.permute.xlu0 0
  %701 = vperm.xlu0 %700, %v607
  %v702 = vpop.permute.xlu0 %701
  %705 = vset.pattern.permute.xlu0 0
  %706 = vperm.xlu0 %705, %v608
  %v707 = vpop.permute.xlu0 %706
  %v710 = vsel %vm456, %v604, 0
  %v713 = vsel %vm456, %v605, 0
  %v716 = vsel %vm77, %v698, 0
  %718 = vmatpush.msra.mxu0 0.0
  %719 = vmatpush.msra.mxu0 0.0
  %720 = vmatpush.msra.mxu0 0.0
  %721 = vmatpush.msra.mxu0 0.0
  %722 = vmatpush.msra.mxu0 0.0
  %723 = vmatpush.msra.mxu0 0.0
  %724 = vmatpush.msra.mxu0 0.0
  %725 = vmatpush.msra.mxu0 0.0
  %726 = vmatpush.msra.mxu0 0.0
  %727 = vmatpush.msra.mxu0 0.0
  %728 = vmatpush.msra.mxu0 0.0
  %729 = vmatpush.msra.mxu0 0.0
  %730 = vmatpush.msra.mxu0 0.0
  %731 = vmatpush.msra.mxu0 %v716
  %732 = vmatpush.msra.mxu0 %v602
  %733 = vmatpush.msra.mxu0 %v601
  %734 = vmatmul.f32.gmra.mxu0 %v710
  %v735 = vpop.f32.mrf.mxu0
  %v736 = vadd.f32 %v702, %v735
  %737 = vmatmul.f32.gmra.mxu0 %v713
  %v738 = vpop.f32.mrf.mxu0
  %v739 = vadd.f32 %v707, %v738
  %740 = vdwg.mxu0
  %v742 = vsel %vm355, %v606, 0
  %v745 = vsel %vm77, %v639, 0
  %v748 = vsel %vm77, %v659, 0
  %v751 = vsel %vm77, %v679, 0
  %753 = vmatpush.msra.mxu0 0.0
  %754 = vmatpush.msra.mxu0 0.0
  %755 = vmatpush.msra.mxu0 0.0
  %756 = vmatpush.msra.mxu0 0.0
  %757 = vmatpush.msra.mxu0 0.0
  %758 = vmatpush.msra.mxu0 0.0
  %759 = vmatpush.msra.mxu0 0.0
  %760 = vmatpush.msra.mxu0 0.0
  %761 = vmatpush.msra.mxu0 0.0
  %762 = vmatpush.msra.mxu0 0.0
  %763 = vmatpush.msra.mxu0 0.0
  %764 = vmatpush.msra.mxu0 0.0
  %765 = vmatpush.msra.mxu0 0.0
  %766 = vmatpush.msra.mxu0 0.0
  %767 = vmatpush.msra.mxu0 0.0
  %768 = vmatpush.msra.mxu0 %v745
  %769 = vmatmul.f32.gmra.mxu0 %v742
  %v770 = vpop.f32.mrf.mxu0
  %v771 = vadd.f32 0.0, %v770
  %772 = vdwg.mxu0
  %773 = vmatpush.msra.mxu0 0.0
  %774 = vmatpush.msra.mxu0 0.0
  %775 = vmatpush.msra.mxu0 0.0
  %776 = vmatpush.msra.mxu0 0.0
  %777 = vmatpush.msra.mxu0 0.0
  %778 = vmatpush.msra.mxu0 0.0
  %779 = vmatpush.msra.mxu0 0.0
  %780 = vmatpush.msra.mxu0 0.0
  %781 = vmatpush.msra.mxu0 0.0
  %782 = vmatpush.msra.mxu0 0.0
  %783 = vmatpush.msra.mxu0 0.0
  %784 = vmatpush.msra.mxu0 0.0
  %785 = vmatpush.msra.mxu0 0.0
  %786 = vmatpush.msra.mxu0 0.0
  %787 = vmatpush.msra.mxu0 0.0
  %788 = vmatpush.msra.mxu0 %v748
  %789 = vmatmul.f32.gmra.mxu0 %v742
  %v790 = vpop.f32.mrf.mxu0
  %v791 = vadd.f32 0.0, %v790
  %792 = vdwg.mxu0
  %793 = vmatpush.msra.mxu0 0.0
  %794 = vmatpush.msra.mxu0 0.0
  %795 = vmatpush.msra.mxu0 0.0
  %796 = vmatpush.msra.mxu0 0.0
  %797 = vmatpush.msra.mxu0 0.0
  %798 = vmatpush.msra.mxu0 0.0
  %799 = vmatpush.msra.mxu0 0.0
  %800 = vmatpush.msra.mxu0 0.0
  %801 = vmatpush.msra.mxu0 0.0
  %802 = vmatpush.msra.mxu0 0.0
  %803 = vmatpush.msra.mxu0 0.0
  %804 = vmatpush.msra.mxu0 0.0
  %805 = vmatpush.msra.mxu0 0.0
  %806 = vmatpush.msra.mxu0 0.0
  %807 = vmatpush.msra.mxu0 0.0
  %808 = vmatpush.msra.mxu0 %v751
  %809 = vmatmul.f32.gmra.mxu0 %v742
  %v810 = vpop.f32.mrf.mxu0
  %v811 = vadd.f32 0.0, %v810
  %812 = vdwg.mxu0
  %813 = vst [vmem:[%s14] sm:$0xff] %v736
  %814 = vst [vmem:[%s14 + $0x8] sm:$0xff] %v739
  %815 = vst [vmem:[%s15] sm:$0xf] %v771
  %s816 = scalar_lea.vmem %s15, 4
  %817 = vst [vmem:[%s816] sm:$0xf] %v791
  %s818 = scalar_lea.vmem %s15, 8
  %819 = vst [vmem:[%s818] sm:$0xf] %v811
  // Predicated region
  $region58: #{_lambda_.2} parent=0 // pred_check
    _
  $region59: #{_lambda_.2} parent=0 // pred_check_branch
    %821 = sbr.rel (0) target = $region61
  $region60: #{_lambda_.2} parent=0 // pred_region
    _
  $region61: #{_lambda_.2} parent=0 // pred_fallthru
    _
  // Predicated region
  $region62: #{_lambda_.2} parent=0 // pred_check
    _
  $region63: #{_lambda_.2} parent=0 // pred_check_branch
    %823 = sbr.rel (0) target = $region65
  $region64: #{_lambda_.2} parent=0 // pred_region
    _
  $region65: #{_lambda_.2} parent=0 // pred_fallthru
    _
  // Predicated region
  $region66: #{_lambda_.2} parent=0 // pred_check
    _
  $region67: #{_lambda_.2} parent=0 // pred_check_branch
    %825 = sbr.rel (0) target = $region69
  $region68: #{_lambda_.2} parent=0 // pred_region
    _
  $region69: #{_lambda_.2} parent=0 // pred_fallthru
    _
  // Predicated region
  $region70: #{_lambda_.2} parent=0 // pred_check
    _
  $region71: #{_lambda_.2} parent=0 // pred_check_branch
    %827 = sbr.rel (0) target = $region73
  $region72: #{_lambda_.2} parent=0 // pred_region
    _
  $region73: #{_lambda_.2} parent=0 // pred_fallthru
    _

</llo_original>
